<compile_context>
chip_gen: v7x
topology: tpu7x:2x2x1
jax: 0.10.0
libtpu: 0.0.40
codegen_flags: <defaults>
</compile_context>

<pallas_src>
import functools

import jax
import jax.numpy as jnp
from jax.experimental import pallas as pl
from jax.experimental.pallas import tpu as pltpu

# ----------------------------- configuration -------------------------------
EMBED_DIM = 32        # embedding_dim
FFN_DIM = 64          # ffn_embedding_dim
NUM_HEADS = 4         # num_attention_heads
HEAD_DIM = EMBED_DIM // NUM_HEADS
SEQ_LEN = 8           # T
BATCH = 2             # B
LN_EPS = 1e-5         # torch.nn.LayerNorm default
SCALING = HEAD_DIM ** -0.5
_NEG = -1e30          # mask value for cross-batch attention scores


# ------------------------------- kernel -------------------------------------
def _layer_norm(y, gamma, beta):
    mean = jnp.mean(y, axis=-1, keepdims=True)
    var = jnp.mean((y - mean) ** 2, axis=-1, keepdims=True)
    return (y - mean) * jax.lax.rsqrt(var + LN_EPS) * gamma + beta


def encoder_layer_kernel(x_ref, wqkv_ref, bqkv_ref, wo_ref, w1_ref, b1_ref,
                         w2_ref, ev_ref, o_ref, *, num_heads, batch):
    """Fused attention + LN1 + FFN + LN2 over the whole (T*B, E) activation.

    x_ref:    (N, E) with N = T*B, rows ordered (t, b)  -> batch id = row % B
    wqkv_ref: (E, 3E)   [Wq*scale | Wk | Wv]      bqkv_ref: (1, 3E)
    wo_ref:   (E, E)
    w1_ref:   (E, F)    b1_ref: (1, F)            w2_ref:   (F, E)
    ev_ref:   (6, E)    rows = [bo, ln1_g, ln1_b, b2, ln2_g, ln2_b]
    """
    N, E = x_ref.shape
    D = E // num_heads

    x = x_ref[...]                                            # (N, E)

    ev = ev_ref[...]                                          # (6, E)
    bo, g1, be1, b2, g2, be2 = (ev[i:i + 1, :] for i in range(6))

    # Fused QKV projection (attention scaling already folded into Wq / bq).
    qkv = jnp.dot(x, wqkv_ref[...],
                  preferred_element_type=jnp.float32) + bqkv_ref[...]   # (N, 3E)

    # Block-diagonal batch mask over the flattened rows.
    row_b = jax.lax.broadcasted_iota(jnp.int32, (N, N), 0) % batch
    col_b = jax.lax.broadcasted_iota(jnp.int32, (N, N), 1) % batch
    bmask = row_b == col_b                                    # (N, N)

    wo = wo_ref[...]                                          # (E, E)

    # Per-head attention, heads unrolled statically (2-D ops only; no 3-D
    # reshape/transpose needed at D=8).  The head concat is folded into the
    # output projection: attn_out = sum_h ctx_h @ Wo[h*D:(h+1)*D, :].
    attn_out = None
    for h in range(num_heads):
        qh = qkv[:, h * D:(h + 1) * D]                        # (N, D)
        kh = qkv[:, E + h * D:E + (h + 1) * D]                # (N, D)
        vh = qkv[:, 2 * E + h * D:2 * E + (h + 1) * D]        # (N, D)
        s = jnp.einsum("nd,md->nm", qh, kh,
                       preferred_element_type=jnp.float32)    # (N, N)
        s = jnp.where(bmask, s, _NEG)
        s = s - jnp.max(s, axis=-1, keepdims=True)
        p = jnp.exp(s)
        p = p / jnp.sum(p, axis=-1, keepdims=True)
        ctx_h = jnp.dot(p, vh, preferred_element_type=jnp.float32)      # (N, D)
        part = jnp.dot(ctx_h, wo[h * D:(h + 1) * D, :],
                       preferred_element_type=jnp.float32)              # (N, E)
        attn_out = part if attn_out is None else attn_out + part
    attn_out = attn_out + bo

    # residual + post-LN  (layer_norm_first=False path)
    y = _layer_norm(x + attn_out, g1, be1)

    # FFN (relu) + residual + final LN
    hdn = jnp.dot(y, w1_ref[...], preferred_element_type=jnp.float32) + b1_ref[...]
    hdn = jnp.maximum(hdn, 0.0)                               # activation_fn='relu'
    z = jnp.dot(hdn, w2_ref[...], preferred_element_type=jnp.float32) + b2

    o_ref[...] = _layer_norm(y + z, g2, be2)


# ------------------------------- wrapper -------------------------------------
def pack_params(p):
    """One-time constant transform of the parameters:
       - fold the 1/sqrt(head_dim) attention scaling into Wq and bq
       - pack Wq/Wk/Wv into one (E, 3E) weight and the biases into (1, 3E)
       - stack the small per-E vectors into a single (6, E) array."""
    return {
        "wqkv": jnp.concatenate([p["wq"] * SCALING, p["wk"], p["wv"]], axis=1),
        "bqkv": jnp.concatenate([p["bq"] * SCALING, p["bk"], p["bv"]], axis=1),
        "wo": p["wo"],
        "w1": p["w1"],
        "b1": p["b1"],
        "w2": p["w2"],
        "ev": jnp.concatenate([p["bo"], p["ln1_g"], p["ln1_b"],
                               p["b2"], p["ln2_g"], p["ln2_b"]], axis=0),
    }


def transformer_sentence_encoder_layer(x_tbe, packed):
    """x_tbe: (T, B, E) float32.  Returns (out_tbe, attn=None, input_after_ln=None)."""
    T, B, E = x_tbe.shape
    N = T * B
    F_ = packed["w1"].shape[1]

    # Free row-major view (no data movement); rows ordered (t, b).
    x = x_tbe.reshape(N, E)

    def full(shape):
        return pl.BlockSpec(shape, lambda i, _s=shape: (0,) * len(_s))

    out = pl.pallas_call(
        functools.partial(encoder_layer_kernel, num_heads=NUM_HEADS, batch=B),
        out_shape=jax.ShapeDtypeStruct((N, E), jnp.float32),
        grid_spec=pltpu.PrefetchScalarGridSpec(
            num_scalar_prefetch=0,
            grid=(1,),
            in_specs=[
                full((N, E)),                      # x
                full((E, 3 * E)), full((1, 3 * E)),  # packed QKV weight / bias
                full((E, E)),                      # Wo
                full((E, F_)), full((1, F_)),      # fc1
                full((F_, E)),                     # fc2
                full((6, E)),                      # bo, LN1(g,b), b2, LN2(g,b)
            ],
            out_specs=full((N, E)),
        ),
        compiler_params=pltpu.CompilerParams(dimension_semantics=("arbitrary",)),
    )(x, packed["wqkv"], packed["bqkv"], packed["wo"],
      packed["w1"], packed["b1"], packed["w2"], packed["ev"])

    out_tbe = out.reshape(T, B, E)                 # free reshape back to (T, B, E)
    # attn weights not computed (need_weights=False); input_after_layer_norm is
    # None because layer_norm_first=False.
    return out_tbe, None, None


# ------------------------- pure-JAX reference --------------------------------
def reference(x_tbe, p):
    x = jnp.transpose(x_tbe, (1, 0, 2))           # (B, T, E)

    def ln(y, g, b):
        mean = jnp.mean(y, axis=-1, keepdims=True)
        var = jnp.mean((y - mean) ** 2, axis=-1, keepdims=True)
        return (y - mean) / jnp.sqrt(var + LN_EPS) * g + b

    q = (x @ p["wq"] + p["bq"]) * SCALING
    k = x @ p["wk"] + p["bk"]
    v = x @ p["wv"] + p["bv"]
    B, T, E = x.shape
    qh = q.reshape(B, T, NUM_HEADS, HEAD_DIM).transpose(0, 2, 1, 3)
    kh = k.reshape(B, T, NUM_HEADS, HEAD_DIM).transpose(0, 2, 1, 3)
    vh = v.reshape(B, T, NUM_HEADS, HEAD_DIM).transpose(0, 2, 1, 3)
    s = jnp.einsum("bhtd,bhsd->bhts", qh, kh)
    pattn = jax.nn.softmax(s, axis=-1)
    ctx = jnp.einsum("bhts,bhsd->bhtd", pattn, vh).transpose(0, 2, 1, 3).reshape(B, T, E)
    attn_out = ctx @ p["wo"] + p["bo"]
    y = ln(x + attn_out, p["ln1_g"], p["ln1_b"])
    h = jnp.maximum(y @ p["w1"] + p["b1"], 0.0)
    z = h @ p["w2"] + p["b2"]
    out = ln(y + z, p["ln2_g"], p["ln2_b"])
    return jnp.transpose(out, (1, 0, 2))


# --------------------------------- main ---------------------------------------
def init_params(key):
    ks = jax.random.split(key, 12)
    s = 0.02
    E, F_ = EMBED_DIM, FFN_DIM
    # weights stored pre-transposed as (in, out) so kernels do x @ W
    return {
        "wq": s * jax.random.normal(ks[0], (E, E), jnp.float32),
        "bq": jnp.zeros((1, E), jnp.float32),
        "wk": s * jax.random.normal(ks[1], (E, E), jnp.float32),
        "bk": jnp.zeros((1, E), jnp.float32),
        "wv": s * jax.random.normal(ks[2], (E, E), jnp.float32),
        "bv": jnp.zeros((1, E), jnp.float32),
        "wo": s * jax.random.normal(ks[3], (E, E), jnp.float32),
        "bo": jnp.zeros((1, E), jnp.float32),
        "ln1_g": jnp.ones((1, E), jnp.float32),
        "ln1_b": jnp.zeros((1, E), jnp.float32),
        "w1": s * jax.random.normal(ks[4], (E, F_), jnp.float32),
        "b1": 0.01 * jnp.ones((1, F_), jnp.float32),
        "w2": s * jax.random.normal(ks[5], (F_, E), jnp.float32),
        "b2": 0.01 * jnp.ones((1, E), jnp.float32),
        "ln2_g": jnp.ones((1, E), jnp.float32),
        "ln2_b": jnp.zeros((1, E), jnp.float32),
    }


if __name__ == "__main__":
    key = jax.random.PRNGKey(0)
    pkey, xkey = jax.random.split(key)
    params = init_params(pkey)
    packed = pack_params(params)                   # one-time constant transform

    # input: (T, B, E) per fairseq convention
    x = jax.random.normal(xkey, (SEQ_LEN, BATCH, EMBED_DIM), jnp.float32)

    out, attn, input_after_ln = transformer_sentence_encoder_layer(x, packed)
    out = jax.block_until_ready(out)

    ref = jax.block_until_ready(reference(x, params))
    assert out.shape == (SEQ_LEN, BATCH, EMBED_DIM)
    assert jnp.allclose(out, ref, atol=1e-4, rtol=1e-4), "mismatch vs JAX reference"
    # TODO(synk): dropout layers are identity here (inference mode); training-mode
    # stochastic dropout would need pltpu.prng_* inside the kernel.
    print("KERNEL_OK")
</pallas_src>

<mosaic_0001>
module attributes {stable_mosaic.version = 11 : i64} {
  func.func @encoder_layer_kernel(%arg0: i32, %arg1: memref<16x32xf32, #tpu.memory_space<vmem>>, %arg2: memref<32x96xf32, #tpu.memory_space<vmem>>, %arg3: memref<1x96xf32, #tpu.memory_space<vmem>>, %arg4: memref<32x32xf32, #tpu.memory_space<vmem>>, %arg5: memref<32x64xf32, #tpu.memory_space<vmem>>, %arg6: memref<1x64xf32, #tpu.memory_space<vmem>>, %arg7: memref<64x32xf32, #tpu.memory_space<vmem>>, %arg8: memref<6x32xf32, #tpu.memory_space<vmem>>, %arg9: memref<16x32xf32, #tpu.memory_space<vmem>>) attributes {dimension_semantics = [#tpu.dimension_semantics<arbitrary>], iteration_bounds = array<i64: 1>, scalar_prefetch = 0 : i64, scratch_operands = 0 : i64, tpu.core_type = #tpu.core_type<tc>, window_params = [{pipeline_mode = #tpu.pipeline_mode<synchronous>, transform_indices = @transform_0, window_bounds = array<i64: 16, 32>}, {pipeline_mode = #tpu.pipeline_mode<synchronous>, transform_indices = @transform_1, window_bounds = array<i64: 32, 96>}, {pipeline_mode = #tpu.pipeline_mode<synchronous>, transform_indices = @transform_2, window_bounds = array<i64: 1, 96>}, {pipeline_mode = #tpu.pipeline_mode<synchronous>, transform_indices = @transform_3, window_bounds = array<i64: 32, 32>}, {pipeline_mode = #tpu.pipeline_mode<synchronous>, transform_indices = @transform_4, window_bounds = array<i64: 32, 64>}, {pipeline_mode = #tpu.pipeline_mode<synchronous>, transform_indices = @transform_5, window_bounds = array<i64: 1, 64>}, {pipeline_mode = #tpu.pipeline_mode<synchronous>, transform_indices = @transform_6, window_bounds = array<i64: 64, 32>}, {pipeline_mode = #tpu.pipeline_mode<synchronous>, transform_indices = @transform_7, window_bounds = array<i64: 6, 32>}, {pipeline_mode = #tpu.pipeline_mode<synchronous>, transform_indices = @transform_8, window_bounds = array<i64: 16, 32>}]} {
    %c0 = arith.constant 0 : index
    %c0_0 = arith.constant 0 : index
    %0 = vector.load %arg1[%c0, %c0_0] : memref<16x32xf32, #tpu.memory_space<vmem>>, vector<16x32xf32>
    %c0_1 = arith.constant 0 : index
    %c0_2 = arith.constant 0 : index
    %1 = vector.load %arg8[%c0_1, %c0_2] : memref<6x32xf32, #tpu.memory_space<vmem>>, vector<6x32xf32>
    %2 = vector.extract_strided_slice %1 {offsets = [0, 0], sizes = [1, 32], strides = [1, 1]} : vector<6x32xf32> to vector<1x32xf32>
    %3 = vector.extract_strided_slice %1 {offsets = [1, 0], sizes = [1, 32], strides = [1, 1]} : vector<6x32xf32> to vector<1x32xf32>
    %4 = vector.extract_strided_slice %1 {offsets = [2, 0], sizes = [1, 32], strides = [1, 1]} : vector<6x32xf32> to vector<1x32xf32>
    %5 = vector.extract_strided_slice %1 {offsets = [3, 0], sizes = [1, 32], strides = [1, 1]} : vector<6x32xf32> to vector<1x32xf32>
    %6 = vector.extract_strided_slice %1 {offsets = [4, 0], sizes = [1, 32], strides = [1, 1]} : vector<6x32xf32> to vector<1x32xf32>
    %7 = vector.extract_strided_slice %1 {offsets = [5, 0], sizes = [1, 32], strides = [1, 1]} : vector<6x32xf32> to vector<1x32xf32>
    %c0_3 = arith.constant 0 : index
    %c0_4 = arith.constant 0 : index
    %8 = vector.load %arg2[%c0_3, %c0_4] : memref<32x96xf32, #tpu.memory_space<vmem>>, vector<32x96xf32>
    %cst = arith.constant dense<0.000000e+00> : vector<16x96xf32>
    %9 = tpu.matmul %0, %8, %cst {dimension_numbers = #tpu.dot_dimension_numbers<[1], [0], [0], [1], [0, 0, 1, 1], [], []>} : vector<16x32xf32>, vector<32x96xf32>, vector<16x96xf32> -> vector<16x96xf32>
    %c0_5 = arith.constant 0 : index
    %c0_6 = arith.constant 0 : index
    %10 = vector.load %arg3[%c0_5, %c0_6] : memref<1x96xf32, #tpu.memory_space<vmem>>, vector<1x96xf32>
    %11 = vector.broadcast %10 : vector<1x96xf32> to vector<16x96xf32>
    %12 = arith.addf %9, %11 : vector<16x96xf32>
    %13 = tpu.iota {dimensions = array<i32: 0>} : vector<16x16xi32>
    %c2_i32 = arith.constant 2 : i32
    %c0_i32 = arith.constant 0 : i32
    %14 = arith.cmpi eq, %c2_i32, %c0_i32 : i32
    %c1_i32 = arith.constant 1 : i32
    %15 = arith.select %14, %c1_i32, %c2_i32 : i32
    %16 = vector.broadcast %15 : i32 to vector<16x16xi32>
    %17 = arith.remsi %13, %16 : vector<16x16xi32>
    %c0_i32_7 = arith.constant 0 : i32
    %18 = vector.broadcast %c0_i32_7 : i32 to vector<16x16xi32>
    %19 = arith.cmpi ne, %17, %18 : vector<16x16xi32>
    %c0_i32_8 = arith.constant 0 : i32
    %20 = vector.broadcast %c0_i32_8 : i32 to vector<16x16xi32>
    %21 = arith.cmpi slt, %17, %20 : vector<16x16xi32>
    %c0_i32_9 = arith.constant 0 : i32
    %22 = arith.cmpi slt, %15, %c0_i32_9 : i32
    %23 = vector.broadcast %22 : i1 to vector<16x16xi1>
    %24 = vector.broadcast %23 : vector<16x16xi1> to vector<16x16xi1>
    %25 = arith.xori %21, %24 : vector<16x16xi1>
    %26 = arith.andi %25, %19 : vector<16x16xi1>
    %27 = vector.broadcast %15 : i32 to vector<16x16xi32>
    %28 = arith.addi %17, %27 : vector<16x16xi32>
    %29 = arith.select %26, %28, %17 : vector<16x16xi1>, vector<16x16xi32>
    %30 = tpu.iota {dimensions = array<i32: 1>} : vector<16x16xi32>
    %c2_i32_10 = arith.constant 2 : i32
    %c0_i32_11 = arith.constant 0 : i32
    %31 = arith.cmpi eq, %c2_i32_10, %c0_i32_11 : i32
    %c1_i32_12 = arith.constant 1 : i32
    %32 = arith.select %31, %c1_i32_12, %c2_i32_10 : i32
    %33 = vector.broadcast %32 : i32 to vector<16x16xi32>
    %34 = arith.remsi %30, %33 : vector<16x16xi32>
    %c0_i32_13 = arith.constant 0 : i32
    %35 = vector.broadcast %c0_i32_13 : i32 to vector<16x16xi32>
    %36 = arith.cmpi ne, %34, %35 : vector<16x16xi32>
    %c0_i32_14 = arith.constant 0 : i32
    %37 = vector.broadcast %c0_i32_14 : i32 to vector<16x16xi32>
    %38 = arith.cmpi slt, %34, %37 : vector<16x16xi32>
    %c0_i32_15 = arith.constant 0 : i32
    %39 = arith.cmpi slt, %32, %c0_i32_15 : i32
    %40 = vector.broadcast %39 : i1 to vector<16x16xi1>
    %41 = vector.broadcast %40 : vector<16x16xi1> to vector<16x16xi1>
    %42 = arith.xori %38, %41 : vector<16x16xi1>
    %43 = arith.andi %42, %36 : vector<16x16xi1>
    %44 = vector.broadcast %32 : i32 to vector<16x16xi32>
    %45 = arith.addi %34, %44 : vector<16x16xi32>
    %46 = arith.select %43, %45, %34 : vector<16x16xi1>, vector<16x16xi32>
    %47 = arith.cmpi eq, %29, %46 : vector<16x16xi32>
    %c0_16 = arith.constant 0 : index
    %c0_17 = arith.constant 0 : index
    %48 = vector.load %arg4[%c0_16, %c0_17] : memref<32x32xf32, #tpu.memory_space<vmem>>, vector<32x32xf32>
    %49 = vector.extract_strided_slice %12 {offsets = [0, 0], sizes = [16, 8], strides = [1, 1]} : vector<16x96xf32> to vector<16x8xf32>
    %50 = vector.extract_strided_slice %12 {offsets = [0, 32], sizes = [16, 8], strides = [1, 1]} : vector<16x96xf32> to vector<16x8xf32>
    %51 = vector.extract_strided_slice %12 {offsets = [0, 64], sizes = [16, 8], strides = [1, 1]} : vector<16x96xf32> to vector<16x8xf32>
    "tpu.trace_start"() <{level = 10 : i32, message = "nd,md->nm"}> : () -> ()
    %cst_18 = arith.constant dense<0.000000e+00> : vector<16x16xf32>
    %52 = tpu.matmul %49, %50, %cst_18 {dimension_numbers = #tpu.dot_dimension_numbers<[1], [1], [0], [0], [0, 0, 1, 0], [], []>} : vector<16x8xf32>, vector<16x8xf32>, vector<16x16xf32> -> vector<16x16xf32>
    %cst_19 = arith.constant -1.000000e+30 : f32
    "tpu.trace_stop"() : () -> ()
    %53 = vector.broadcast %cst_19 : f32 to vector<16x16xf32>
    %54 = arith.select %47, %52, %53 : vector<16x16xi1>, vector<16x16xf32>
    %cst_20 = arith.constant dense<0xFF800000> : vector<16xf32>
    %55 = vector.multi_reduction <maximumf>, %54, %cst_20 [1] : vector<16x16xf32> to vector<16xf32>
    %56 = vector.shape_cast %55 : vector<16xf32> to vector<16x1xf32>
    %57 = vector.broadcast %56 : vector<16x1xf32> to vector<16x16xf32>
    %58 = arith.subf %54, %57 : vector<16x16xf32>
    %59 = math.exp %58 : vector<16x16xf32>
    %cst_21 = arith.constant dense<0.000000e+00> : vector<16xf32>
    %60 = vector.multi_reduction <add>, %59, %cst_21 [1] : vector<16x16xf32> to vector<16xf32>
    %61 = vector.shape_cast %60 : vector<16xf32> to vector<16x1xf32>
    %62 = vector.broadcast %61 : vector<16x1xf32> to vector<16x16xf32>
    %63 = arith.divf %59, %62 : vector<16x16xf32>
    %cst_22 = arith.constant dense<0.000000e+00> : vector<16x8xf32>
    %64 = tpu.matmul %63, %51, %cst_22 {dimension_numbers = #tpu.dot_dimension_numbers<[1], [0], [0], [1], [0, 0, 1, 1], [], []>} : vector<16x16xf32>, vector<16x8xf32>, vector<16x8xf32> -> vector<16x8xf32>
    %65 = vector.extract_strided_slice %48 {offsets = [0, 0], sizes = [8, 32], strides = [1, 1]} : vector<32x32xf32> to vector<8x32xf32>
    %cst_23 = arith.constant dense<0.000000e+00> : vector<16x32xf32>
    %66 = tpu.matmul %64, %65, %cst_23 {dimension_numbers = #tpu.dot_dimension_numbers<[1], [0], [0], [1], [0, 0, 1, 1], [], []>} : vector<16x8xf32>, vector<8x32xf32>, vector<16x32xf32> -> vector<16x32xf32>
    %67 = vector.extract_strided_slice %12 {offsets = [0, 8], sizes = [16, 8], strides = [1, 1]} : vector<16x96xf32> to vector<16x8xf32>
    %68 = vector.extract_strided_slice %12 {offsets = [0, 40], sizes = [16, 8], strides = [1, 1]} : vector<16x96xf32> to vector<16x8xf32>
    %69 = vector.extract_strided_slice %12 {offsets = [0, 72], sizes = [16, 8], strides = [1, 1]} : vector<16x96xf32> to vector<16x8xf32>
    "tpu.trace_start"() <{level = 10 : i32, message = "nd,md->nm"}> : () -> ()
    %cst_24 = arith.constant dense<0.000000e+00> : vector<16x16xf32>
    %70 = tpu.matmul %67, %68, %cst_24 {dimension_numbers = #tpu.dot_dimension_numbers<[1], [1], [0], [0], [0, 0, 1, 0], [], []>} : vector<16x8xf32>, vector<16x8xf32>, vector<16x16xf32> -> vector<16x16xf32>
    %cst_25 = arith.constant -1.000000e+30 : f32
    "tpu.trace_stop"() : () -> ()
    %71 = vector.broadcast %cst_25 : f32 to vector<16x16xf32>
    %72 = arith.select %47, %70, %71 : vector<16x16xi1>, vector<16x16xf32>
    %cst_26 = arith.constant dense<0xFF800000> : vector<16xf32>
    %73 = vector.multi_reduction <maximumf>, %72, %cst_26 [1] : vector<16x16xf32> to vector<16xf32>
    %74 = vector.shape_cast %73 : vector<16xf32> to vector<16x1xf32>
    %75 = vector.broadcast %74 : vector<16x1xf32> to vector<16x16xf32>
    %76 = arith.subf %72, %75 : vector<16x16xf32>
    %77 = math.exp %76 : vector<16x16xf32>
    %cst_27 = arith.constant dense<0.000000e+00> : vector<16xf32>
    %78 = vector.multi_reduction <add>, %77, %cst_27 [1] : vector<16x16xf32> to vector<16xf32>
    %79 = vector.shape_cast %78 : vector<16xf32> to vector<16x1xf32>
    %80 = vector.broadcast %79 : vector<16x1xf32> to vector<16x16xf32>
    %81 = arith.divf %77, %80 : vector<16x16xf32>
    %cst_28 = arith.constant dense<0.000000e+00> : vector<16x8xf32>
    %82 = tpu.matmul %81, %69, %cst_28 {dimension_numbers = #tpu.dot_dimension_numbers<[1], [0], [0], [1], [0, 0, 1, 1], [], []>} : vector<16x16xf32>, vector<16x8xf32>, vector<16x8xf32> -> vector<16x8xf32>
    %83 = vector.extract_strided_slice %48 {offsets = [8, 0], sizes = [8, 32], strides = [1, 1]} : vector<32x32xf32> to vector<8x32xf32>
    %cst_29 = arith.constant dense<0.000000e+00> : vector<16x32xf32>
    %84 = tpu.matmul %82, %83, %cst_29 {dimension_numbers = #tpu.dot_dimension_numbers<[1], [0], [0], [1], [0, 0, 1, 1], [], []>} : vector<16x8xf32>, vector<8x32xf32>, vector<16x32xf32> -> vector<16x32xf32>
    %85 = arith.addf %66, %84 : vector<16x32xf32>
    %86 = vector.extract_strided_slice %12 {offsets = [0, 16], sizes = [16, 8], strides = [1, 1]} : vector<16x96xf32> to vector<16x8xf32>
    %87 = vector.extract_strided_slice %12 {offsets = [0, 48], sizes = [16, 8], strides = [1, 1]} : vector<16x96xf32> to vector<16x8xf32>
    %88 = vector.extract_strided_slice %12 {offsets = [0, 80], sizes = [16, 8], strides = [1, 1]} : vector<16x96xf32> to vector<16x8xf32>
    "tpu.trace_start"() <{level = 10 : i32, message = "nd,md->nm"}> : () -> ()
    %cst_30 = arith.constant dense<0.000000e+00> : vector<16x16xf32>
    %89 = tpu.matmul %86, %87, %cst_30 {dimension_numbers = #tpu.dot_dimension_numbers<[1], [1], [0], [0], [0, 0, 1, 0], [], []>} : vector<16x8xf32>, vector<16x8xf32>, vector<16x16xf32> -> vector<16x16xf32>
    %cst_31 = arith.constant -1.000000e+30 : f32
    "tpu.trace_stop"() : () -> ()
    %90 = vector.broadcast %cst_31 : f32 to vector<16x16xf32>
    %91 = arith.select %47, %89, %90 : vector<16x16xi1>, vector<16x16xf32>
    %cst_32 = arith.constant dense<0xFF800000> : vector<16xf32>
    %92 = vector.multi_reduction <maximumf>, %91, %cst_32 [1] : vector<16x16xf32> to vector<16xf32>
    %93 = vector.shape_cast %92 : vector<16xf32> to vector<16x1xf32>
    %94 = vector.broadcast %93 : vector<16x1xf32> to vector<16x16xf32>
    %95 = arith.subf %91, %94 : vector<16x16xf32>
    %96 = math.exp %95 : vector<16x16xf32>
    %cst_33 = arith.constant dense<0.000000e+00> : vector<16xf32>
    %97 = vector.multi_reduction <add>, %96, %cst_33 [1] : vector<16x16xf32> to vector<16xf32>
    %98 = vector.shape_cast %97 : vector<16xf32> to vector<16x1xf32>
    %99 = vector.broadcast %98 : vector<16x1xf32> to vector<16x16xf32>
    %100 = arith.divf %96, %99 : vector<16x16xf32>
    %cst_34 = arith.constant dense<0.000000e+00> : vector<16x8xf32>
    %101 = tpu.matmul %100, %88, %cst_34 {dimension_numbers = #tpu.dot_dimension_numbers<[1], [0], [0], [1], [0, 0, 1, 1], [], []>} : vector<16x16xf32>, vector<16x8xf32>, vector<16x8xf32> -> vector<16x8xf32>
    %102 = vector.extract_strided_slice %48 {offsets = [16, 0], sizes = [8, 32], strides = [1, 1]} : vector<32x32xf32> to vector<8x32xf32>
    %cst_35 = arith.constant dense<0.000000e+00> : vector<16x32xf32>
    %103 = tpu.matmul %101, %102, %cst_35 {dimension_numbers = #tpu.dot_dimension_numbers<[1], [0], [0], [1], [0, 0, 1, 1], [], []>} : vector<16x8xf32>, vector<8x32xf32>, vector<16x32xf32> -> vector<16x32xf32>
    %104 = arith.addf %85, %103 : vector<16x32xf32>
    %105 = vector.extract_strided_slice %12 {offsets = [0, 24], sizes = [16, 8], strides = [1, 1]} : vector<16x96xf32> to vector<16x8xf32>
    %106 = vector.extract_strided_slice %12 {offsets = [0, 56], sizes = [16, 8], strides = [1, 1]} : vector<16x96xf32> to vector<16x8xf32>
    %107 = vector.extract_strided_slice %12 {offsets = [0, 88], sizes = [16, 8], strides = [1, 1]} : vector<16x96xf32> to vector<16x8xf32>
    "tpu.trace_start"() <{level = 10 : i32, message = "nd,md->nm"}> : () -> ()
    %cst_36 = arith.constant dense<0.000000e+00> : vector<16x16xf32>
    %108 = tpu.matmul %105, %106, %cst_36 {dimension_numbers = #tpu.dot_dimension_numbers<[1], [1], [0], [0], [0, 0, 1, 0], [], []>} : vector<16x8xf32>, vector<16x8xf32>, vector<16x16xf32> -> vector<16x16xf32>
    %cst_37 = arith.constant -1.000000e+30 : f32
    "tpu.trace_stop"() : () -> ()
    %109 = vector.broadcast %cst_37 : f32 to vector<16x16xf32>
    %110 = arith.select %47, %108, %109 : vector<16x16xi1>, vector<16x16xf32>
    %cst_38 = arith.constant dense<0xFF800000> : vector<16xf32>
    %111 = vector.multi_reduction <maximumf>, %110, %cst_38 [1] : vector<16x16xf32> to vector<16xf32>
    %112 = vector.shape_cast %111 : vector<16xf32> to vector<16x1xf32>
    %113 = vector.broadcast %112 : vector<16x1xf32> to vector<16x16xf32>
    %114 = arith.subf %110, %113 : vector<16x16xf32>
    %115 = math.exp %114 : vector<16x16xf32>
    %cst_39 = arith.constant dense<0.000000e+00> : vector<16xf32>
    %116 = vector.multi_reduction <add>, %115, %cst_39 [1] : vector<16x16xf32> to vector<16xf32>
    %117 = vector.shape_cast %116 : vector<16xf32> to vector<16x1xf32>
    %118 = vector.broadcast %117 : vector<16x1xf32> to vector<16x16xf32>
    %119 = arith.divf %115, %118 : vector<16x16xf32>
    %cst_40 = arith.constant dense<0.000000e+00> : vector<16x8xf32>
    %120 = tpu.matmul %119, %107, %cst_40 {dimension_numbers = #tpu.dot_dimension_numbers<[1], [0], [0], [1], [0, 0, 1, 1], [], []>} : vector<16x16xf32>, vector<16x8xf32>, vector<16x8xf32> -> vector<16x8xf32>
    %121 = vector.extract_strided_slice %48 {offsets = [24, 0], sizes = [8, 32], strides = [1, 1]} : vector<32x32xf32> to vector<8x32xf32>
    %cst_41 = arith.constant dense<0.000000e+00> : vector<16x32xf32>
    %122 = tpu.matmul %120, %121, %cst_41 {dimension_numbers = #tpu.dot_dimension_numbers<[1], [0], [0], [1], [0, 0, 1, 1], [], []>} : vector<16x8xf32>, vector<8x32xf32>, vector<16x32xf32> -> vector<16x32xf32>
    %123 = arith.addf %104, %122 : vector<16x32xf32>
    %124 = vector.broadcast %2 : vector<1x32xf32> to vector<16x32xf32>
    %125 = arith.addf %123, %124 : vector<16x32xf32>
    %126 = arith.addf %0, %125 : vector<16x32xf32>
    %cst_42 = arith.constant dense<0.000000e+00> : vector<16xf32>
    %127 = vector.multi_reduction <add>, %126, %cst_42 [1] : vector<16x32xf32> to vector<16xf32>
    %128 = vector.shape_cast %127 : vector<16xf32> to vector<16x1xf32>
    %cst_43 = arith.constant 3.200000e+01 : f32
    %129 = vector.broadcast %cst_43 : f32 to vector<16x1xf32>
    %130 = arith.divf %128, %129 : vector<16x1xf32>
    %131 = vector.broadcast %130 : vector<16x1xf32> to vector<16x32xf32>
    %132 = arith.subf %126, %131 : vector<16x32xf32>
    %133 = arith.mulf %132, %132 : vector<16x32xf32>
    %cst_44 = arith.constant dense<0.000000e+00> : vector<16xf32>
    %134 = vector.multi_reduction <add>, %133, %cst_44 [1] : vector<16x32xf32> to vector<16xf32>
    %135 = vector.shape_cast %134 : vector<16xf32> to vector<16x1xf32>
    %cst_45 = arith.constant 3.200000e+01 : f32
    %136 = vector.broadcast %cst_45 : f32 to vector<16x1xf32>
    %137 = arith.divf %135, %136 : vector<16x1xf32>
    %138 = vector.broadcast %130 : vector<16x1xf32> to vector<16x32xf32>
    %139 = arith.subf %126, %138 : vector<16x32xf32>
    %cst_46 = arith.constant 9.99999974E-6 : f32
    %140 = vector.broadcast %cst_46 : f32 to vector<16x1xf32>
    %141 = arith.addf %137, %140 : vector<16x1xf32>
    %142 = math.rsqrt %141 : vector<16x1xf32>
    %143 = vector.broadcast %142 : vector<16x1xf32> to vector<16x32xf32>
    %144 = arith.mulf %139, %143 : vector<16x32xf32>
    %145 = vector.broadcast %3 : vector<1x32xf32> to vector<16x32xf32>
    %146 = arith.mulf %144, %145 : vector<16x32xf32>
    %147 = vector.broadcast %4 : vector<1x32xf32> to vector<16x32xf32>
    %148 = arith.addf %146, %147 : vector<16x32xf32>
    %c0_47 = arith.constant 0 : index
    %c0_48 = arith.constant 0 : index
    %149 = vector.load %arg5[%c0_47, %c0_48] : memref<32x64xf32, #tpu.memory_space<vmem>>, vector<32x64xf32>
    %cst_49 = arith.constant dense<0.000000e+00> : vector<16x64xf32>
    %150 = tpu.matmul %148, %149, %cst_49 {dimension_numbers = #tpu.dot_dimension_numbers<[1], [0], [0], [1], [0, 0, 1, 1], [], []>} : vector<16x32xf32>, vector<32x64xf32>, vector<16x64xf32> -> vector<16x64xf32>
    %c0_50 = arith.constant 0 : index
    %c0_51 = arith.constant 0 : index
    %151 = vector.load %arg6[%c0_50, %c0_51] : memref<1x64xf32, #tpu.memory_space<vmem>>, vector<1x64xf32>
    %152 = vector.broadcast %151 : vector<1x64xf32> to vector<16x64xf32>
    %153 = arith.addf %150, %152 : vector<16x64xf32>
    %cst_52 = arith.constant 0.000000e+00 : f32
    %154 = vector.broadcast %cst_52 : f32 to vector<16x64xf32>
    %155 = arith.maximumf %153, %154 : vector<16x64xf32>
    %c0_53 = arith.constant 0 : index
    %c0_54 = arith.constant 0 : index
    %156 = vector.load %arg7[%c0_53, %c0_54] : memref<64x32xf32, #tpu.memory_space<vmem>>, vector<64x32xf32>
    %cst_55 = arith.constant dense<0.000000e+00> : vector<16x32xf32>
    %157 = tpu.matmul %155, %156, %cst_55 {dimension_numbers = #tpu.dot_dimension_numbers<[1], [0], [0], [1], [0, 0, 1, 1], [], []>} : vector<16x64xf32>, vector<64x32xf32>, vector<16x32xf32> -> vector<16x32xf32>
    %158 = vector.broadcast %5 : vector<1x32xf32> to vector<16x32xf32>
    %159 = arith.addf %157, %158 : vector<16x32xf32>
    %160 = arith.addf %148, %159 : vector<16x32xf32>
    %cst_56 = arith.constant dense<0.000000e+00> : vector<16xf32>
    %161 = vector.multi_reduction <add>, %160, %cst_56 [1] : vector<16x32xf32> to vector<16xf32>
    %162 = vector.shape_cast %161 : vector<16xf32> to vector<16x1xf32>
    %cst_57 = arith.constant 3.200000e+01 : f32
    %163 = vector.broadcast %cst_57 : f32 to vector<16x1xf32>
    %164 = arith.divf %162, %163 : vector<16x1xf32>
    %165 = vector.broadcast %164 : vector<16x1xf32> to vector<16x32xf32>
    %166 = arith.subf %160, %165 : vector<16x32xf32>
    %167 = arith.mulf %166, %166 : vector<16x32xf32>
    %cst_58 = arith.constant dense<0.000000e+00> : vector<16xf32>
    %168 = vector.multi_reduction <add>, %167, %cst_58 [1] : vector<16x32xf32> to vector<16xf32>
    %169 = vector.shape_cast %168 : vector<16xf32> to vector<16x1xf32>
    %cst_59 = arith.constant 3.200000e+01 : f32
    %170 = vector.broadcast %cst_59 : f32 to vector<16x1xf32>
    %171 = arith.divf %169, %170 : vector<16x1xf32>
    %172 = vector.broadcast %164 : vector<16x1xf32> to vector<16x32xf32>
    %173 = arith.subf %160, %172 : vector<16x32xf32>
    %cst_60 = arith.constant 9.99999974E-6 : f32
    %174 = vector.broadcast %cst_60 : f32 to vector<16x1xf32>
    %175 = arith.addf %171, %174 : vector<16x1xf32>
    %176 = math.rsqrt %175 : vector<16x1xf32>
    %177 = vector.broadcast %176 : vector<16x1xf32> to vector<16x32xf32>
    %178 = arith.mulf %173, %177 : vector<16x32xf32>
    %179 = vector.broadcast %6 : vector<1x32xf32> to vector<16x32xf32>
    %180 = arith.mulf %178, %179 : vector<16x32xf32>
    %181 = vector.broadcast %7 : vector<1x32xf32> to vector<16x32xf32>
    %182 = arith.addf %180, %181 : vector<16x32xf32>
    %c0_61 = arith.constant 0 : index
    %c0_62 = arith.constant 0 : index
    %183 = vector.load %arg9[%c0_61, %c0_62] : memref<16x32xf32, #tpu.memory_space<vmem>>, vector<16x32xf32>
    tpu.vector_store %arg9[%c0_61, %c0_62], %182 {strides = array<i32>} : memref<16x32xf32, #tpu.memory_space<vmem>>, vector<16x32xf32>,
    return
  }
  func.func @transform_0(%arg0: i32) -> (i32, i32) {
    %c0_i32 = arith.constant 0 : i32
    %c0_i32_0 = arith.constant 0 : i32
    %c0_i32_1 = arith.constant 0 : i32
    return %c0_i32, %c0_i32_0 : i32, i32
  }
  func.func @transform_1(%arg0: i32) -> (i32, i32) {
    %c0_i32 = arith.constant 0 : i32
    %c0_i32_0 = arith.constant 0 : i32
    %c0_i32_1 = arith.constant 0 : i32
    return %c0_i32, %c0_i32_0 : i32, i32
  }
  func.func @transform_2(%arg0: i32) -> (i32, i32) {
    %c0_i32 = arith.constant 0 : i32
    %c0_i32_0 = arith.constant 0 : i32
    %c0_i32_1 = arith.constant 0 : i32
    return %c0_i32, %c0_i32_0 : i32, i32
  }
  func.func @transform_3(%arg0: i32) -> (i32, i32) {
    %c0_i32 = arith.constant 0 : i32
    %c0_i32_0 = arith.constant 0 : i32
    %c0_i32_1 = arith.constant 0 : i32
    return %c0_i32, %c0_i32_0 : i32, i32
  }
  func.func @transform_4(%arg0: i32) -> (i32, i32) {
    %c0_i32 = arith.constant 0 : i32
    %c0_i32_0 = arith.constant 0 : i32
    %c0_i32_1 = arith.constant 0 : i32
    return %c0_i32, %c0_i32_0 : i32, i32
  }
  func.func @transform_5(%arg0: i32) -> (i32, i32) {
    %c0_i32 = arith.constant 0 : i32
    %c0_i32_0 = arith.constant 0 : i32
    %c0_i32_1 = arith.constant 0 : i32
    return %c0_i32, %c0_i32_0 : i32, i32
  }
  func.func @transform_6(%arg0: i32) -> (i32, i32) {
    %c0_i32 = arith.constant 0 : i32
    %c0_i32_0 = arith.constant 0 : i32
    %c0_i32_1 = arith.constant 0 : i32
    return %c0_i32, %c0_i32_0 : i32, i32
  }
  func.func @transform_7(%arg0: i32) -> (i32, i32) {
    %c0_i32 = arith.constant 0 : i32
    %c0_i32_0 = arith.constant 0 : i32
    %c0_i32_1 = arith.constant 0 : i32
    return %c0_i32, %c0_i32_0 : i32, i32
  }
  func.func @transform_8(%arg0: i32) -> (i32, i32) {
    %c0_i32 = arith.constant 0 : i32
    %c0_i32_0 = arith.constant 0 : i32
    %c0_i32_1 = arith.constant 0 : i32
    return %c0_i32, %c0_i32_0 : i32, i32
  }
}

</mosaic_0001>

<llo_original>
// kernel: tpu_custom_call.1
$region0: #{tpu_custom_call.1}
  #allocation0 [shape = 'u32[]', space=smem, size = 0x4, offset = 0x4, fixed_abs, tag = 'smem constant byte address 0x4 - core index']
  #allocation1 [shape = 'u32[144,128]{1,0:T(1,128)}', space=vmem, size = 0x12000, scoped, tag = 'internal scratch']
  %s0 = inlined_call_operand.hbm [shape: f32[16,32], index: 0, kind: input, shape index: {}]
  %s1 = inlined_call_operand.vmem [shape: f32[32,96], index: 1, kind: input, shape index: {}]
  %s2 = inlined_call_operand.vmem [shape: f32[1,96], index: 2, kind: input, shape index: {}]
  %s3 = inlined_call_operand.vmem [shape: f32[32,32], index: 3, kind: input, shape index: {}]
  %s4 = inlined_call_operand.vmem [shape: f32[32,64], index: 4, kind: input, shape index: {}]
  %s5 = inlined_call_operand.vmem [shape: f32[1,64], index: 5, kind: input, shape index: {}]
  %s6 = inlined_call_operand.vmem [shape: f32[64,32], index: 6, kind: input, shape index: {}]
  %s7 = inlined_call_operand.vmem [shape: f32[6,32], index: 7, kind: input, shape index: {}]
  %s8 = inlined_call_operand.hbm [shape: f32[16,32], index: 8, kind: output, shape index: {}]
  %s9 = sld [smem:[#allocation0]]
  $region46: #{tpu_custom_call.1} parent=0
    _
  %s11 = ssub.s32 1, %s9
  %s12 = scalar_select 0, %s11, %s9
  $region1: #{tpu_custom_call.1} parent=0
    #allocation2 [shape = 'u8[8192]{0}', space=vmem, size = 0x2000, scoped, tag = 'input window, operand 0, single buffered']
    #allocation3 [shape = 's32[1]{0}', space=sflag, size = 0x4, scoped, tag = 'scoped memory for tpu_custom_call.1']
    #allocation4 [shape = 's32[1]{0}', space=sflag, size = 0x4, scoped, tag = 'scoped memory for tpu_custom_call.1']
    #allocation5 [shape = 'u8[8192]{0}', space=vmem, size = 0x2000, scoped, tag = 'output window, operand 0, single buffered']
    %13 = vsyncpa [#allocation3], 0
    %14 = vsyncpa [#allocation4], 0
    // Predicated region
    $region2: #{tpu_custom_call.1} parent=1 // pred_check
      _
    $region3: #{tpu_custom_call.1} parent=1 // pred_check_branch
      %16 = sbr.rel (0) target = $region5
    $region4: #{tpu_custom_call.1} parent=1 // pred_region
      %s18 = ssub.s32 256, 256
      %19 = vsyncadd [#allocation3], %s18
      %s20 = sshll.u32 [#allocation2], 4
      %s21 = int_to_ptr.vmem [resolvable:$true] %s20
      %26 = dma.hbm_to_vmem [thread:$0]  %s0, 256, %s21, [#allocation3], 128, 128, 8
    $region5: #{tpu_custom_call.1} parent=1 // pred_fallthru
      _
    // Predicated region
    $region6: #{tpu_custom_call.1} parent=1 // pred_check
      _
    $region7: #{tpu_custom_call.1} parent=1 // pred_check_branch
      %28 = sbr.rel (0) target = $region9
    $region8: #{tpu_custom_call.1} parent=1 // pred_region
      _
    $region9: #{tpu_custom_call.1} parent=1 // pred_fallthru
      _
    // Predicated region
    $region10: #{tpu_custom_call.1} parent=1 // pred_check
      _
    $region11: #{tpu_custom_call.1} parent=1 // pred_check_branch
      %30 = sbr.rel (0) target = $region13
    $region12: #{tpu_custom_call.1} parent=1 // pred_region
      _
    $region13: #{tpu_custom_call.1} parent=1 // pred_fallthru
      _
    // Predicated region
    $region14: #{tpu_custom_call.1} parent=1 // pred_check
      _
    $region15: #{tpu_custom_call.1} parent=1 // pred_check_branch
      %32 = sbr.rel (0) target = $region17
    $region16: #{tpu_custom_call.1} parent=1 // pred_region
      _
    $region17: #{tpu_custom_call.1} parent=1 // pred_fallthru
      _
    // Predicated region
    $region18: #{tpu_custom_call.1} parent=1 // pred_check
      _
    $region19: #{tpu_custom_call.1} parent=1 // pred_check_branch
      %34 = sbr.rel (0) target = $region21
    $region20: #{tpu_custom_call.1} parent=1 // pred_region
      _
    $region21: #{tpu_custom_call.1} parent=1 // pred_fallthru
      _
    // Predicated region
    $region22: #{tpu_custom_call.1} parent=1 // pred_check
      _
    $region23: #{tpu_custom_call.1} parent=1 // pred_check_branch
      %36 = sbr.rel (0) target = $region25
    $region24: #{tpu_custom_call.1} parent=1 // pred_region
      _
    $region25: #{tpu_custom_call.1} parent=1 // pred_fallthru
      _
    // Predicated region
    $region26: #{tpu_custom_call.1} parent=1 // pred_check
      _
    $region27: #{tpu_custom_call.1} parent=1 // pred_check_branch
      %38 = sbr.rel (0) target = $region29
    $region28: #{tpu_custom_call.1} parent=1 // pred_region
      _
    $region29: #{tpu_custom_call.1} parent=1 // pred_fallthru
      _
    // Predicated region
    $region30: #{tpu_custom_call.1} parent=1 // pred_check
      _
    $region31: #{tpu_custom_call.1} parent=1 // pred_check_branch
      %40 = sbr.rel (0) target = $region33
    $region32: #{tpu_custom_call.1} parent=1 // pred_region
      _
    $region33: #{tpu_custom_call.1} parent=1 // pred_fallthru
      _
    // Predicated region
    $region34: #{tpu_custom_call.1} parent=1 // pred_check
      _
    $region35: #{tpu_custom_call.1} parent=1 // pred_check_branch
      %42 = sbr.rel (0) target = $region37
    $region36: #{tpu_custom_call.1} parent=1 // pred_region
      %43 = dma.done [#allocation3], 256
    $region37: #{tpu_custom_call.1} parent=1 // pred_fallthru
      _
    %v44 = vld [vmem:[#allocation2] sm:$0xff]
    %v45 = vld [vmem:[#allocation2 + $0x8] sm:$0xff]
    %v46 = vld [vmem:[%s7] sm:$0x3f]
    %v47 = vld [vmem:[%s1] sm:$0xff]
    %v48 = vld [vmem:[%s1 + $0x8] sm:$0xff]
    %v49 = vld [vmem:[%s1 + $0x10] sm:$0xff]
    %v50 = vld [vmem:[%s1 + $0x18] sm:$0xff]
    %v51 = vld [vmem:[%s2] sm:$0x1]
    %v53 = vlaneseq
    %v54 = vshrl.u32 %v53, 7
    %v55 = vsub.s32 0, %v54
    %v56 = vrot.slane %v51, %v55
    %vm58 = vcmask 261120
    %v60 = vsel %vm58, %v44, 0
    %v63 = vsel %vm58, %v45, 0
    %65 = vmatprep.subr.mxu0 0.0
    %66 = vmatpush1.msra.mxu0 %v47
    %67 = vmatprep.subr.mxu0 0.0
    %68 = vmatpush1.msra.mxu0 %v48
    %69 = vmatprep.subr.mxu0 0.0
    %70 = vmatpush1.msra.mxu0 %v49
    %71 = vmatprep.subr.mxu0 0.0
    %72 = vmatpush1.msra.mxu0 %v50
    %73 = vmatprep.subr.mxu0 0.0
    %74 = vmatpush1.msra.mxu0 0.0
    %75 = vmatprep.subr.mxu0 0.0
    %76 = vmatpush1.msra.mxu0 0.0
    %77 = vmatprep.subr.mxu0 0.0
    %78 = vmatpush1.msra.mxu0 0.0
    %79 = vmatprep.subr.mxu0 0.0
    %80 = vmatpush1.msra.mxu0 0.0
    %81 = vmatprep.subr.mxu0 0.0
    %82 = vmatpush1.msra.mxu0 0.0
    %83 = vmatprep.subr.mxu0 0.0
    %84 = vmatpush1.msra.mxu0 0.0
    %85 = vmatprep.subr.mxu0 0.0
    %86 = vmatpush1.msra.mxu0 0.0
    %87 = vmatprep.subr.mxu0 0.0
    %88 = vmatpush1.msra.mxu0 0.0
    %89 = vmatprep.subr.mxu0 0.0
    %90 = vmatpush1.msra.mxu0 0.0
    %91 = vmatprep.subr.mxu0 0.0
    %92 = vmatpush1.msra.mxu0 0.0
    %93 = vmatprep.subr.mxu0 0.0
    %94 = vmatpush1.msra.mxu0 0.0
    %95 = vmatprep.subr.mxu0 0.0
    %96 = vmatpush1.msra.mxu0 0.0
    %97 = vmatprep.subr.mxu0 0.0
    %98 = vmatpush1.msra.mxu0 0.0
    %99 = vmatprep.subr.mxu0 0.0
    %100 = vmatpush1.msra.mxu0 0.0
    %101 = vmatprep.subr.mxu0 0.0
    %102 = vmatpush1.msra.mxu0 0.0
    %103 = vmatprep.subr.mxu0 0.0
    %104 = vmatpush1.msra.mxu0 0.0
    %105 = vmatprep.subr.mxu0 0.0
    %106 = vmatpush1.msra.mxu0 0.0
    %107 = vmatprep.subr.mxu0 0.0
    %108 = vmatpush1.msra.mxu0 0.0
    %109 = vmatprep.subr.mxu0 0.0
    %110 = vmatpush1.msra.mxu0 0.0
    %111 = vmatprep.subr.mxu0 0.0
    %112 = vmatpush1.msra.mxu0 0.0
    %113 = vmatprep.subr.mxu0 0.0
    %114 = vmatpush1.msra.mxu0 0.0
    %115 = vmatprep.subr.mxu0 0.0
    %116 = vmatpush1.msra.mxu0 0.0
    %117 = vmatprep.subr.mxu0 0.0
    %118 = vmatpush1.msra.mxu0 0.0
    %119 = vmatprep.subr.mxu0 0.0
    %120 = vmatpush1.msra.mxu0 0.0
    %121 = vmatprep.subr.mxu0 0.0
    %122 = vmatpush1.msra.mxu0 0.0
    %123 = vmatprep.subr.mxu0 0.0
    %124 = vmatpush1.msra.mxu0 0.0
    %125 = vmatprep.subr.mxu0 0.0
    %126 = vmatpush1.msra.mxu0 0.0
    %127 = vmatprep.subr.mxu0 0.0
    %128 = vmatpush1.msra.mxu0 0.0
    %129 = vmatprep.mubr.f32.mxu0 0.0
    %130 = vmatmul.mubr.f32.gmra.mrb[0].mxu0 %v60
    %v131 = vpop.f32.mrb[0].mxu0
    %v132 = vadd.f32 %v56, %v131
    %v133 = vpop.f32.mrb[0].mxu0
    %134 = vmatprep.mubr.f32.mxu0 0.0
    %135 = vmatmul.mubr.f32.gmra.mrb[0].mxu0 %v63
    %v136 = vpop.f32.mrb[0].mxu0
    %v137 = vadd.f32 %v56, %v136
    %v138 = vpop.f32.mrb[0].mxu0
    %139 = vdwg.mxu0
    %v140 = vlaneseq
    %v141 = vshrl.u32 %v140, 7
    %v142 = vadd.s32 %v141, 8
    %vm143 = vcmp.lt.s32.totalorder %v141, 0
    %v144 = vsub.s32 0, %v141
    %v145 = vsel %vm143, %v144, %v141
    %v146 = vshrl.u32 %v145, 1
    %v147 = vand.u32 %v145, 1
    %v148 = vsub.s32 0, %v147
    %v149 = vsel %vm143, %v148, %v147
    %vm150 = vcmp.lt.s32.totalorder %v142, 0
    %v151 = vsub.s32 0, %v142
    %v152 = vsel %vm150, %v151, %v142
    %v153 = vshrl.u32 %v152, 1
    %v154 = vand.u32 %v152, 1
    %v155 = vsub.s32 0, %v154
    %v156 = vsel %vm150, %v155, %v154
    %vm157 = vcmp.ne.s32.totalorder %v149, 0
    %vm158 = vcmp.ne.s32.totalorder %v156, 0
    %vm159 = vcmp.lt.s32.totalorder %v149, 0
    %vm160 = vcmp.lt.s32.totalorder %v156, 0
    %vm161 = vmand %vm159, %vm157
    %vm162 = vmand %vm160, %vm158
    %v163 = vadd.s32 %v149, 2
    %v164 = vadd.s32 %v156, 2
    %v165 = vsel %vm161, %v163, %v149
    %v166 = vsel %vm162, %v164, %v156
    %v167 = vlaneseq
    %v168 = vand.u32 %v167, 127
    %vm169 = vcmp.lt.s32.totalorder %v168, 0
    %v170 = vsub.s32 0, %v168
    %v171 = vsel %vm169, %v170, %v168
    %v172 = vshrl.u32 %v171, 1
    %v173 = vand.u32 %v171, 1
    %v174 = vsub.s32 0, %v173
    %v175 = vsel %vm169, %v174, %v173
    %vm176 = vcmp.ne.s32.totalorder %v175, 0
    %vm177 = vcmp.lt.s32.totalorder %v175, 0
    %vm178 = vmand %vm177, %vm176
    %v179 = vadd.s32 %v175, 2
    %v180 = vsel %vm178, %v179, %v175
    %vm181 = vcmp.eq.s32.totalorder %v165, %v180
    %vm182 = vcmp.eq.s32.totalorder %v166, %v180
    %v183 = vld [vmem:[%s3] sm:$0xff]
    %v184 = vld [vmem:[%s3 + $0x8] sm:$0xff]
    %v185 = vld [vmem:[%s3 + $0x10] sm:$0xff]
    %v186 = vld [vmem:[%s3 + $0x18] sm:$0xff]
    %189 = vrot.lane.b32.xlu0 %v132, 96
    %v190 = vpop.permute.xlu0 %189
    %191 = vrot.lane.b32.xlu0 %v137, 96
    %v192 = vpop.permute.xlu0 %191
    %vm193 = vcmask 64512
    %v194 = vsel %vm193, %v132, 0
    %v196 = vsel %vm193, %v137, 0
    %v198 = vsel %vm193, %v190, 0
    %v200 = vsel %vm193, %v192, 0
    %202 = vmatprep.subr.mxu0 0.0
    %203 = vmatpush1.xpose.msra.mxu0 %v198
    %204 = vmatprep.subr.mxu0 0.0
    %205 = vmatpush1.xpose.msra.mxu0 %v200
    %206 = vmatprep.subr.mxu0 0.0
    %207 = vmatpush1.xpose.msra.mxu0 0.0
    %208 = vmatprep.subr.mxu0 0.0
    %209 = vmatpush1.xpose.msra.mxu0 0.0
    %210 = vmatprep.subr.mxu0 0.0
    %211 = vmatpush1.xpose.msra.mxu0 0.0
    %212 = vmatprep.subr.mxu0 0.0
    %213 = vmatpush1.xpose.msra.mxu0 0.0
    %214 = vmatprep.subr.mxu0 0.0
    %215 = vmatpush1.xpose.msra.mxu0 0.0
    %216 = vmatprep.subr.mxu0 0.0
    %217 = vmatpush1.xpose.msra.mxu0 0.0
    %218 = vmatprep.subr.mxu0 0.0
    %219 = vmatpush1.xpose.msra.mxu0 0.0
    %220 = vmatprep.subr.mxu0 0.0
    %221 = vmatpush1.xpose.msra.mxu0 0.0
    %222 = vmatprep.subr.mxu0 0.0
    %223 = vmatpush1.xpose.msra.mxu0 0.0
    %224 = vmatprep.subr.mxu0 0.0
    %225 = vmatpush1.xpose.msra.mxu0 0.0
    %226 = vmatprep.subr.mxu0 0.0
    %227 = vmatpush1.xpose.msra.mxu0 0.0
    %228 = vmatprep.subr.mxu0 0.0
    %229 = vmatpush1.xpose.msra.mxu0 0.0
    %230 = vmatprep.subr.mxu0 0.0
    %231 = vmatpush1.xpose.msra.mxu0 0.0
    %232 = vmatprep.subr.mxu0 0.0
    %233 = vmatpush1.xpose.msra.mxu0 0.0
    %234 = vmatprep.subr.mxu0 0.0
    %235 = vmatpush1.xpose.msra.mxu0 0.0
    %236 = vmatprep.subr.mxu0 0.0
    %237 = vmatpush1.xpose.msra.mxu0 0.0
    %238 = vmatprep.subr.mxu0 0.0
    %239 = vmatpush1.xpose.msra.mxu0 0.0
    %240 = vmatprep.subr.mxu0 0.0
    %241 = vmatpush1.xpose.msra.mxu0 0.0
    %242 = vmatprep.subr.mxu0 0.0
    %243 = vmatpush1.xpose.msra.mxu0 0.0
    %244 = vmatprep.subr.mxu0 0.0
    %245 = vmatpush1.xpose.msra.mxu0 0.0
    %246 = vmatprep.subr.mxu0 0.0
    %247 = vmatpush1.xpose.msra.mxu0 0.0
    %248 = vmatprep.subr.mxu0 0.0
    %249 = vmatpush1.xpose.msra.mxu0 0.0
    %250 = vmatprep.subr.mxu0 0.0
    %251 = vmatpush1.xpose.msra.mxu0 0.0
    %252 = vmatprep.subr.mxu0 0.0
    %253 = vmatpush1.xpose.msra.mxu0 0.0
    %254 = vmatprep.subr.mxu0 0.0
    %255 = vmatpush1.xpose.msra.mxu0 0.0
    %256 = vmatprep.subr.mxu0 0.0
    %257 = vmatpush1.xpose.msra.mxu0 0.0
    %258 = vmatprep.subr.mxu0 0.0
    %259 = vmatpush1.xpose.msra.mxu0 0.0
    %260 = vmatprep.subr.mxu0 0.0
    %261 = vmatpush1.xpose.msra.mxu0 0.0
    %262 = vmatprep.subr.mxu0 0.0
    %263 = vmatpush1.xpose.msra.mxu0 0.0
    %264 = vmatprep.subr.mxu0 0.0
    %265 = vmatpush1.xpose.msra.mxu0 0.0
    %266 = vmatprep.mubr.f32.mxu0 0.0
    %267 = vmatmul.mubr.f32.gmra.mrb[0].mxu0 %v194
    %v268 = vpop.f32.mrb[0].mxu0
    %v269 = vadd.f32 0.0, %v268
    %v270 = vpop.f32.mrb[0].mxu0
    %271 = vmatprep.mubr.f32.mxu0 0.0
    %272 = vmatmul.mubr.f32.gmra.mrb[0].mxu0 %v196
    %v273 = vpop.f32.mrb[0].mxu0
    %v274 = vadd.f32 0.0, %v273
    %v275 = vpop.f32.mrb[0].mxu0
    %276 = vdwg.mxu0
    %v277 = vsel %vm181, %v269, -1e+30
    %v278 = vsel %vm182, %v274, -1e+30
    %vm279 = vcmask 130048
    %v280 = vsel %vm279, %v277, -inf
    %281 = vmax.xlane.f32.xlu0 %v280
    %v282 = vpop.xlane.xlu0 %281
    %v283 = vsel %vm279, %v278, -inf
    %284 = vmax.xlane.f32.xlu0 %v283
    %v285 = vpop.xlane.xlu0 %284
    %v286 = vsub.f32 %v277, %v282
    %v287 = vsub.f32 %v278, %v285
    %v288 = vmul.f32 %v286, 1.442695
    %v289 = vpow.pop %v288
    %v290 = vmul.f32 %v287, 1.442695
    %v291 = vpow.pop %v290
    %v292 = vsel %vm279, %v289, 0.0
    %293 = vadd.xlane.f32.xlu0 %v292
    %v294 = vpop.xlane.xlu0 %293
    %v295 = vsel %vm279, %v291, 0.0
    %296 = vadd.xlane.f32.xlu0 %v295
    %v297 = vpop.xlane.xlu0 %296
    %v298 = vrcp.pop %v294
    %v299 = vmul.f32 %v289, %v298
    %v300 = vrcp.pop %v297
    %v301 = vmul.f32 %v291, %v300
    %302 = vrot.lane.b32.xlu0 %v132, 64
    %v303 = vpop.permute.xlu0 %302
    %304 = vrot.lane.b32.xlu0 %v137, 64
    %v305 = vpop.permute.xlu0 %304
    %v309 = vsel %vm279, %v299, 0
    %v312 = vsel %vm279, %v301, 0
    %314 = vmatprep.subr.mxu0 0.0
    %315 = vmatpush1.msra.mxu0 %v303
    %316 = vmatprep.subr.mxu0 0.0
    %317 = vmatpush1.msra.mxu0 %v305
    %318 = vmatprep.subr.mxu0 0.0
    %319 = vmatpush1.msra.mxu0 0.0
    %320 = vmatprep.subr.mxu0 0.0
    %321 = vmatpush1.msra.mxu0 0.0
    %322 = vmatprep.subr.mxu0 0.0
    %323 = vmatpush1.msra.mxu0 0.0
    %324 = vmatprep.subr.mxu0 0.0
    %325 = vmatpush1.msra.mxu0 0.0
    %326 = vmatprep.subr.mxu0 0.0
    %327 = vmatpush1.msra.mxu0 0.0
    %328 = vmatprep.subr.mxu0 0.0
    %329 = vmatpush1.msra.mxu0 0.0
    %330 = vmatprep.subr.mxu0 0.0
    %331 = vmatpush1.msra.mxu0 0.0
    %332 = vmatprep.subr.mxu0 0.0
    %333 = vmatpush1.msra.mxu0 0.0
    %334 = vmatprep.subr.mxu0 0.0
    %335 = vmatpush1.msra.mxu0 0.0
    %336 = vmatprep.subr.mxu0 0.0
    %337 = vmatpush1.msra.mxu0 0.0
    %338 = vmatprep.subr.mxu0 0.0
    %339 = vmatpush1.msra.mxu0 0.0
    %340 = vmatprep.subr.mxu0 0.0
    %341 = vmatpush1.msra.mxu0 0.0
    %342 = vmatprep.subr.mxu0 0.0
    %343 = vmatpush1.msra.mxu0 0.0
    %344 = vmatprep.subr.mxu0 0.0
    %345 = vmatpush1.msra.mxu0 0.0
    %346 = vmatprep.subr.mxu0 0.0
    %347 = vmatpush1.msra.mxu0 0.0
    %348 = vmatprep.subr.mxu0 0.0
    %349 = vmatpush1.msra.mxu0 0.0
    %350 = vmatprep.subr.mxu0 0.0
    %351 = vmatpush1.msra.mxu0 0.0
    %352 = vmatprep.subr.mxu0 0.0
    %353 = vmatpush1.msra.mxu0 0.0
    %354 = vmatprep.subr.mxu0 0.0
    %355 = vmatpush1.msra.mxu0 0.0
    %356 = vmatprep.subr.mxu0 0.0
    %357 = vmatpush1.msra.mxu0 0.0
    %358 = vmatprep.subr.mxu0 0.0
    %359 = vmatpush1.msra.mxu0 0.0
    %360 = vmatprep.subr.mxu0 0.0
    %361 = vmatpush1.msra.mxu0 0.0
    %362 = vmatprep.subr.mxu0 0.0
    %363 = vmatpush1.msra.mxu0 0.0
    %364 = vmatprep.subr.mxu0 0.0
    %365 = vmatpush1.msra.mxu0 0.0
    %366 = vmatprep.subr.mxu0 0.0
    %367 = vmatpush1.msra.mxu0 0.0
    %368 = vmatprep.subr.mxu0 0.0
    %369 = vmatpush1.msra.mxu0 0.0
    %370 = vmatprep.subr.mxu0 0.0
    %371 = vmatpush1.msra.mxu0 0.0
    %372 = vmatprep.subr.mxu0 0.0
    %373 = vmatpush1.msra.mxu0 0.0
    %374 = vmatprep.subr.mxu0 0.0
    %375 = vmatpush1.msra.mxu0 0.0
    %376 = vmatprep.subr.mxu0 0.0
    %377 = vmatpush1.msra.mxu0 0.0
    %378 = vmatprep.mubr.f32.mxu0 0.0
    %379 = vmatmul.mubr.f32.gmra.mrb[0].mxu0 %v309
    %v380 = vpop.f32.mrb[0].mxu0
    %v381 = vadd.f32 0.0, %v380
    %v382 = vpop.f32.mrb[0].mxu0
    %383 = vmatprep.mubr.f32.mxu0 0.0
    %384 = vmatmul.mubr.f32.gmra.mrb[0].mxu0 %v312
    %v385 = vpop.f32.mrb[0].mxu0
    %v386 = vadd.f32 0.0, %v385
    %v387 = vpop.f32.mrb[0].mxu0
    %388 = vdwg.mxu0
    %389 = vrot.lane.b32.xlu0 %v132, 120
    %v390 = vpop.permute.xlu0 %389
    %391 = vrot.lane.b32.xlu0 %v137, 120
    %v392 = vpop.permute.xlu0 %391
    %393 = vrot.lane.b32.xlu0 %v132, 88
    %v394 = vpop.permute.xlu0 %393
    %395 = vrot.lane.b32.xlu0 %v137, 88
    %v396 = vpop.permute.xlu0 %395
    %v397 = vsel %vm193, %v390, 0
    %v399 = vsel %vm193, %v392, 0
    %v401 = vsel %vm193, %v394, 0
    %v403 = vsel %vm193, %v396, 0
    %405 = vmatprep.subr.mxu0 0.0
    %406 = vmatpush1.xpose.msra.mxu0 %v401
    %407 = vmatprep.subr.mxu0 0.0
    %408 = vmatpush1.xpose.msra.mxu0 %v403
    %409 = vmatprep.subr.mxu0 0.0
    %410 = vmatpush1.xpose.msra.mxu0 0.0
    %411 = vmatprep.subr.mxu0 0.0
    %412 = vmatpush1.xpose.msra.mxu0 0.0
    %413 = vmatprep.subr.mxu0 0.0
    %414 = vmatpush1.xpose.msra.mxu0 0.0
    %415 = vmatprep.subr.mxu0 0.0
    %416 = vmatpush1.xpose.msra.mxu0 0.0
    %417 = vmatprep.subr.mxu0 0.0
    %418 = vmatpush1.xpose.msra.mxu0 0.0
    %419 = vmatprep.subr.mxu0 0.0
    %420 = vmatpush1.xpose.msra.mxu0 0.0
    %421 = vmatprep.subr.mxu0 0.0
    %422 = vmatpush1.xpose.msra.mxu0 0.0
    %423 = vmatprep.subr.mxu0 0.0
    %424 = vmatpush1.xpose.msra.mxu0 0.0
    %425 = vmatprep.subr.mxu0 0.0
    %426 = vmatpush1.xpose.msra.mxu0 0.0
    %427 = vmatprep.subr.mxu0 0.0
    %428 = vmatpush1.xpose.msra.mxu0 0.0
    %429 = vmatprep.subr.mxu0 0.0
    %430 = vmatpush1.xpose.msra.mxu0 0.0
    %431 = vmatprep.subr.mxu0 0.0
    %432 = vmatpush1.xpose.msra.mxu0 0.0
    %433 = vmatprep.subr.mxu0 0.0
    %434 = vmatpush1.xpose.msra.mxu0 0.0
    %435 = vmatprep.subr.mxu0 0.0
    %436 = vmatpush1.xpose.msra.mxu0 0.0
    %437 = vmatprep.subr.mxu0 0.0
    %438 = vmatpush1.xpose.msra.mxu0 0.0
    %439 = vmatprep.subr.mxu0 0.0
    %440 = vmatpush1.xpose.msra.mxu0 0.0
    %441 = vmatprep.subr.mxu0 0.0
    %442 = vmatpush1.xpose.msra.mxu0 0.0
    %443 = vmatprep.subr.mxu0 0.0
    %444 = vmatpush1.xpose.msra.mxu0 0.0
    %445 = vmatprep.subr.mxu0 0.0
    %446 = vmatpush1.xpose.msra.mxu0 0.0
    %447 = vmatprep.subr.mxu0 0.0
    %448 = vmatpush1.xpose.msra.mxu0 0.0
    %449 = vmatprep.subr.mxu0 0.0
    %450 = vmatpush1.xpose.msra.mxu0 0.0
    %451 = vmatprep.subr.mxu0 0.0
    %452 = vmatpush1.xpose.msra.mxu0 0.0
    %453 = vmatprep.subr.mxu0 0.0
    %454 = vmatpush1.xpose.msra.mxu0 0.0
    %455 = vmatprep.subr.mxu0 0.0
    %456 = vmatpush1.xpose.msra.mxu0 0.0
    %457 = vmatprep.subr.mxu0 0.0
    %458 = vmatpush1.xpose.msra.mxu0 0.0
    %459 = vmatprep.subr.mxu0 0.0
    %460 = vmatpush1.xpose.msra.mxu0 0.0
    %461 = vmatprep.subr.mxu0 0.0
    %462 = vmatpush1.xpose.msra.mxu0 0.0
    %463 = vmatprep.subr.mxu0 0.0
    %464 = vmatpush1.xpose.msra.mxu0 0.0
    %465 = vmatprep.subr.mxu0 0.0
    %466 = vmatpush1.xpose.msra.mxu0 0.0
    %467 = vmatprep.subr.mxu0 0.0
    %468 = vmatpush1.xpose.msra.mxu0 0.0
    %469 = vmatprep.mubr.f32.mxu0 0.0
    %470 = vmatmul.mubr.f32.gmra.mrb[0].mxu0 %v397
    %v471 = vpop.f32.mrb[0].mxu0
    %v472 = vadd.f32 0.0, %v471
    %v473 = vpop.f32.mrb[0].mxu0
    %474 = vmatprep.mubr.f32.mxu0 0.0
    %475 = vmatmul.mubr.f32.gmra.mrb[0].mxu0 %v399
    %v476 = vpop.f32.mrb[0].mxu0
    %v477 = vadd.f32 0.0, %v476
    %v478 = vpop.f32.mrb[0].mxu0
    %479 = vdwg.mxu0
    %v480 = vsel %vm181, %v472, -1e+30
    %v481 = vsel %vm182, %v477, -1e+30
    %v482 = vsel %vm279, %v480, -inf
    %483 = vmax.xlane.f32.xlu0 %v482
    %v484 = vpop.xlane.xlu0 %483
    %v485 = vsel %vm279, %v481, -inf
    %486 = vmax.xlane.f32.xlu0 %v485
    %v487 = vpop.xlane.xlu0 %486
    %v488 = vsub.f32 %v480, %v484
    %v489 = vsub.f32 %v481, %v487
    %v490 = vmul.f32 %v488, 1.442695
    %v491 = vpow.pop %v490
    %v492 = vmul.f32 %v489, 1.442695
    %v493 = vpow.pop %v492
    %v494 = vsel %vm279, %v491, 0.0
    %495 = vadd.xlane.f32.xlu0 %v494
    %v496 = vpop.xlane.xlu0 %495
    %v497 = vsel %vm279, %v493, 0.0
    %498 = vadd.xlane.f32.xlu0 %v497
    %v499 = vpop.xlane.xlu0 %498
    %v500 = vrcp.pop %v496
    %v501 = vmul.f32 %v491, %v500
    %v502 = vrcp.pop %v499
    %v503 = vmul.f32 %v493, %v502
    %504 = vrot.lane.b32.xlu0 %v132, 56
    %v505 = vpop.permute.xlu0 %504
    %506 = vrot.lane.b32.xlu0 %v137, 56
    %v507 = vpop.permute.xlu0 %506
    %v511 = vsel %vm279, %v501, 0
    %v514 = vsel %vm279, %v503, 0
    %516 = vmatprep.subr.mxu0 0.0
    %517 = vmatpush1.msra.mxu0 %v505
    %518 = vmatprep.subr.mxu0 0.0
    %519 = vmatpush1.msra.mxu0 %v507
    %520 = vmatprep.subr.mxu0 0.0
    %521 = vmatpush1.msra.mxu0 0.0
    %522 = vmatprep.subr.mxu0 0.0
    %523 = vmatpush1.msra.mxu0 0.0
    %524 = vmatprep.subr.mxu0 0.0
    %525 = vmatpush1.msra.mxu0 0.0
    %526 = vmatprep.subr.mxu0 0.0
    %527 = vmatpush1.msra.mxu0 0.0
    %528 = vmatprep.subr.mxu0 0.0
    %529 = vmatpush1.msra.mxu0 0.0
    %530 = vmatprep.subr.mxu0 0.0
    %531 = vmatpush1.msra.mxu0 0.0
    %532 = vmatprep.subr.mxu0 0.0
    %533 = vmatpush1.msra.mxu0 0.0
    %534 = vmatprep.subr.mxu0 0.0
    %535 = vmatpush1.msra.mxu0 0.0
    %536 = vmatprep.subr.mxu0 0.0
    %537 = vmatpush1.msra.mxu0 0.0
    %538 = vmatprep.subr.mxu0 0.0
    %539 = vmatpush1.msra.mxu0 0.0
    %540 = vmatprep.subr.mxu0 0.0
    %541 = vmatpush1.msra.mxu0 0.0
    %542 = vmatprep.subr.mxu0 0.0
    %543 = vmatpush1.msra.mxu0 0.0
    %544 = vmatprep.subr.mxu0 0.0
    %545 = vmatpush1.msra.mxu0 0.0
    %546 = vmatprep.subr.mxu0 0.0
    %547 = vmatpush1.msra.mxu0 0.0
    %548 = vmatprep.subr.mxu0 0.0
    %549 = vmatpush1.msra.mxu0 0.0
    %550 = vmatprep.subr.mxu0 0.0
    %551 = vmatpush1.msra.mxu0 0.0
    %552 = vmatprep.subr.mxu0 0.0
    %553 = vmatpush1.msra.mxu0 0.0
    %554 = vmatprep.subr.mxu0 0.0
    %555 = vmatpush1.msra.mxu0 0.0
    %556 = vmatprep.subr.mxu0 0.0
    %557 = vmatpush1.msra.mxu0 0.0
    %558 = vmatprep.subr.mxu0 0.0
    %559 = vmatpush1.msra.mxu0 0.0
    %560 = vmatprep.subr.mxu0 0.0
    %561 = vmatpush1.msra.mxu0 0.0
    %562 = vmatprep.subr.mxu0 0.0
    %563 = vmatpush1.msra.mxu0 0.0
    %564 = vmatprep.subr.mxu0 0.0
    %565 = vmatpush1.msra.mxu0 0.0
    %566 = vmatprep.subr.mxu0 0.0
    %567 = vmatpush1.msra.mxu0 0.0
    %568 = vmatprep.subr.mxu0 0.0
    %569 = vmatpush1.msra.mxu0 0.0
    %570 = vmatprep.subr.mxu0 0.0
    %571 = vmatpush1.msra.mxu0 0.0
    %572 = vmatprep.subr.mxu0 0.0
    %573 = vmatpush1.msra.mxu0 0.0
    %574 = vmatprep.subr.mxu0 0.0
    %575 = vmatpush1.msra.mxu0 0.0
    %576 = vmatprep.subr.mxu0 0.0
    %577 = vmatpush1.msra.mxu0 0.0
    %578 = vmatprep.subr.mxu0 0.0
    %579 = vmatpush1.msra.mxu0 0.0
    %580 = vmatprep.mubr.f32.mxu0 0.0
    %581 = vmatmul.mubr.f32.gmra.mrb[0].mxu0 %v511
    %v582 = vpop.f32.mrb[0].mxu0
    %v583 = vadd.f32 0.0, %v582
    %v584 = vpop.f32.mrb[0].mxu0
    %585 = vmatprep.mubr.f32.mxu0 0.0
    %586 = vmatmul.mubr.f32.gmra.mrb[0].mxu0 %v514
    %v587 = vpop.f32.mrb[0].mxu0
    %v588 = vadd.f32 0.0, %v587
    %v589 = vpop.f32.mrb[0].mxu0
    %590 = vdwg.mxu0
    %v592 = vsel %vm193, %v583, 0
    %v595 = vsel %vm193, %v588, 0
    %597 = vmatprep.subr.mxu0 0.0
    %598 = vmatpush1.msra.mxu0 %v184
    %599 = vmatprep.subr.mxu0 0.0
    %600 = vmatpush1.msra.mxu0 0.0
    %601 = vmatprep.subr.mxu0 0.0
    %602 = vmatpush1.msra.mxu0 0.0
    %603 = vmatprep.subr.mxu0 0.0
    %604 = vmatpush1.msra.mxu0 0.0
    %605 = vmatprep.subr.mxu0 0.0
    %606 = vmatpush1.msra.mxu0 0.0
    %607 = vmatprep.subr.mxu0 0.0
    %608 = vmatpush1.msra.mxu0 0.0
    %609 = vmatprep.subr.mxu0 0.0
    %610 = vmatpush1.msra.mxu0 0.0
    %611 = vmatprep.subr.mxu0 0.0
    %612 = vmatpush1.msra.mxu0 0.0
    %613 = vmatprep.subr.mxu0 0.0
    %614 = vmatpush1.msra.mxu0 0.0
    %615 = vmatprep.subr.mxu0 0.0
    %616 = vmatpush1.msra.mxu0 0.0
    %617 = vmatprep.subr.mxu0 0.0
    %618 = vmatpush1.msra.mxu0 0.0
    %619 = vmatprep.subr.mxu0 0.0
    %620 = vmatpush1.msra.mxu0 0.0
    %621 = vmatprep.subr.mxu0 0.0
    %622 = vmatpush1.msra.mxu0 0.0
    %623 = vmatprep.subr.mxu0 0.0
    %624 = vmatpush1.msra.mxu0 0.0
    %625 = vmatprep.subr.mxu0 0.0
    %626 = vmatpush1.msra.mxu0 0.0
    %627 = vmatprep.subr.mxu0 0.0
    %628 = vmatpush1.msra.mxu0 0.0
    %629 = vmatprep.subr.mxu0 0.0
    %630 = vmatpush1.msra.mxu0 0.0
    %631 = vmatprep.subr.mxu0 0.0
    %632 = vmatpush1.msra.mxu0 0.0
    %633 = vmatprep.subr.mxu0 0.0
    %634 = vmatpush1.msra.mxu0 0.0
    %635 = vmatprep.subr.mxu0 0.0
    %636 = vmatpush1.msra.mxu0 0.0
    %637 = vmatprep.subr.mxu0 0.0
    %638 = vmatpush1.msra.mxu0 0.0
    %639 = vmatprep.subr.mxu0 0.0
    %640 = vmatpush1.msra.mxu0 0.0
    %641 = vmatprep.subr.mxu0 0.0
    %642 = vmatpush1.msra.mxu0 0.0
    %643 = vmatprep.subr.mxu0 0.0
    %644 = vmatpush1.msra.mxu0 0.0
    %645 = vmatprep.subr.mxu0 0.0
    %646 = vmatpush1.msra.mxu0 0.0
    %647 = vmatprep.subr.mxu0 0.0
    %648 = vmatpush1.msra.mxu0 0.0
    %649 = vmatprep.subr.mxu0 0.0
    %650 = vmatpush1.msra.mxu0 0.0
    %651 = vmatprep.subr.mxu0 0.0
    %652 = vmatpush1.msra.mxu0 0.0
    %653 = vmatprep.subr.mxu0 0.0
    %654 = vmatpush1.msra.mxu0 0.0
    %655 = vmatprep.subr.mxu0 0.0
    %656 = vmatpush1.msra.mxu0 0.0
    %657 = vmatprep.subr.mxu0 0.0
    %658 = vmatpush1.msra.mxu0 0.0
    %659 = vmatprep.subr.mxu0 0.0
    %660 = vmatpush1.msra.mxu0 0.0
    %661 = vmatprep.mubr.f32.mxu0 0.0
    %662 = vmatmul.mubr.f32.gmra.mrb[0].mxu0 %v592
    %v663 = vpop.f32.mrb[0].mxu0
    %v664 = vadd.f32 0.0, %v663
    %v665 = vpop.f32.mrb[0].mxu0
    %666 = vmatprep.mubr.f32.mxu0 0.0
    %667 = vmatmul.mubr.f32.gmra.mrb[0].mxu0 %v595
    %v668 = vpop.f32.mrb[0].mxu0
    %v669 = vadd.f32 0.0, %v668
    %v670 = vpop.f32.mrb[0].mxu0
    %671 = vdwg.mxu0
    %v673 = vsel %vm193, %v381, 0
    %v676 = vsel %vm193, %v386, 0
    %678 = vmatprep.subr.mxu0 0.0
    %679 = vmatpush1.msra.mxu0 %v183
    %680 = vmatprep.subr.mxu0 0.0
    %681 = vmatpush1.msra.mxu0 0.0
    %682 = vmatprep.subr.mxu0 0.0
    %683 = vmatpush1.msra.mxu0 0.0
    %684 = vmatprep.subr.mxu0 0.0
    %685 = vmatpush1.msra.mxu0 0.0
    %686 = vmatprep.subr.mxu0 0.0
    %687 = vmatpush1.msra.mxu0 0.0
    %688 = vmatprep.subr.mxu0 0.0
    %689 = vmatpush1.msra.mxu0 0.0
    %690 = vmatprep.subr.mxu0 0.0
    %691 = vmatpush1.msra.mxu0 0.0
    %692 = vmatprep.subr.mxu0 0.0
    %693 = vmatpush1.msra.mxu0 0.0
    %694 = vmatprep.subr.mxu0 0.0
    %695 = vmatpush1.msra.mxu0 0.0
    %696 = vmatprep.subr.mxu0 0.0
    %697 = vmatpush1.msra.mxu0 0.0
    %698 = vmatprep.subr.mxu0 0.0
    %699 = vmatpush1.msra.mxu0 0.0
    %700 = vmatprep.subr.mxu0 0.0
    %701 = vmatpush1.msra.mxu0 0.0
    %702 = vmatprep.subr.mxu0 0.0
    %703 = vmatpush1.msra.mxu0 0.0
    %704 = vmatprep.subr.mxu0 0.0
    %705 = vmatpush1.msra.mxu0 0.0
    %706 = vmatprep.subr.mxu0 0.0
    %707 = vmatpush1.msra.mxu0 0.0
    %708 = vmatprep.subr.mxu0 0.0
    %709 = vmatpush1.msra.mxu0 0.0
    %710 = vmatprep.subr.mxu0 0.0
    %711 = vmatpush1.msra.mxu0 0.0
    %712 = vmatprep.subr.mxu0 0.0
    %713 = vmatpush1.msra.mxu0 0.0
    %714 = vmatprep.subr.mxu0 0.0
    %715 = vmatpush1.msra.mxu0 0.0
    %716 = vmatprep.subr.mxu0 0.0
    %717 = vmatpush1.msra.mxu0 0.0
    %718 = vmatprep.subr.mxu0 0.0
    %719 = vmatpush1.msra.mxu0 0.0
    %720 = vmatprep.subr.mxu0 0.0
    %721 = vmatpush1.msra.mxu0 0.0
    %722 = vmatprep.subr.mxu0 0.0
    %723 = vmatpush1.msra.mxu0 0.0
    %724 = vmatprep.subr.mxu0 0.0
    %725 = vmatpush1.msra.mxu0 0.0
    %726 = vmatprep.subr.mxu0 0.0
    %727 = vmatpush1.msra.mxu0 0.0
    %728 = vmatprep.subr.mxu0 0.0
    %729 = vmatpush1.msra.mxu0 0.0
    %730 = vmatprep.subr.mxu0 0.0
    %731 = vmatpush1.msra.mxu0 0.0
    %732 = vmatprep.subr.mxu0 0.0
    %733 = vmatpush1.msra.mxu0 0.0
    %734 = vmatprep.subr.mxu0 0.0
    %735 = vmatpush1.msra.mxu0 0.0
    %736 = vmatprep.subr.mxu0 0.0
    %737 = vmatpush1.msra.mxu0 0.0
    %738 = vmatprep.subr.mxu0 0.0
    %739 = vmatpush1.msra.mxu0 0.0
    %740 = vmatprep.subr.mxu0 0.0
    %741 = vmatpush1.msra.mxu0 0.0
    %742 = vmatprep.mubr.f32.mxu0 0.0
    %743 = vmatmul.mubr.f32.gmra.mrb[0].mxu0 %v673
    %v744 = vpop.f32.mrb[0].mxu0
    %v745 = vadd.f32 %v664, %v744
    %v746 = vpop.f32.mrb[0].mxu0
    %747 = vmatprep.mubr.f32.mxu0 0.0
    %748 = vmatmul.mubr.f32.gmra.mrb[0].mxu0 %v676
    %v749 = vpop.f32.mrb[0].mxu0
    %v750 = vadd.f32 %v669, %v749
    %v751 = vpop.f32.mrb[0].mxu0
    %752 = vdwg.mxu0
    %753 = vrot.lane.b32.xlu0 %v132, 112
    %v754 = vpop.permute.xlu0 %753
    %755 = vrot.lane.b32.xlu0 %v137, 112
    %v756 = vpop.permute.xlu0 %755
    %757 = vrot.lane.b32.xlu0 %v132, 80
    %v758 = vpop.permute.xlu0 %757
    %759 = vrot.lane.b32.xlu0 %v137, 80
    %v760 = vpop.permute.xlu0 %759
    %v761 = vsel %vm193, %v754, 0
    %v763 = vsel %vm193, %v756, 0
    %v765 = vsel %vm193, %v758, 0
    %v767 = vsel %vm193, %v760, 0
    %769 = vmatprep.subr.mxu0 0.0
    %770 = vmatpush1.xpose.msra.mxu0 %v765
    %771 = vmatprep.subr.mxu0 0.0
    %772 = vmatpush1.xpose.msra.mxu0 %v767
    %773 = vmatprep.subr.mxu0 0.0
    %774 = vmatpush1.xpose.msra.mxu0 0.0
    %775 = vmatprep.subr.mxu0 0.0
    %776 = vmatpush1.xpose.msra.mxu0 0.0
    %777 = vmatprep.subr.mxu0 0.0
    %778 = vmatpush1.xpose.msra.mxu0 0.0
    %779 = vmatprep.subr.mxu0 0.0
    %780 = vmatpush1.xpose.msra.mxu0 0.0
    %781 = vmatprep.subr.mxu0 0.0
    %782 = vmatpush1.xpose.msra.mxu0 0.0
    %783 = vmatprep.subr.mxu0 0.0
    %784 = vmatpush1.xpose.msra.mxu0 0.0
    %785 = vmatprep.subr.mxu0 0.0
    %786 = vmatpush1.xpose.msra.mxu0 0.0
    %787 = vmatprep.subr.mxu0 0.0
    %788 = vmatpush1.xpose.msra.mxu0 0.0
    %789 = vmatprep.subr.mxu0 0.0
    %790 = vmatpush1.xpose.msra.mxu0 0.0
    %791 = vmatprep.subr.mxu0 0.0
    %792 = vmatpush1.xpose.msra.mxu0 0.0
    %793 = vmatprep.subr.mxu0 0.0
    %794 = vmatpush1.xpose.msra.mxu0 0.0
    %795 = vmatprep.subr.mxu0 0.0
    %796 = vmatpush1.xpose.msra.mxu0 0.0
    %797 = vmatprep.subr.mxu0 0.0
    %798 = vmatpush1.xpose.msra.mxu0 0.0
    %799 = vmatprep.subr.mxu0 0.0
    %800 = vmatpush1.xpose.msra.mxu0 0.0
    %801 = vmatprep.subr.mxu0 0.0
    %802 = vmatpush1.xpose.msra.mxu0 0.0
    %803 = vmatprep.subr.mxu0 0.0
    %804 = vmatpush1.xpose.msra.mxu0 0.0
    %805 = vmatprep.subr.mxu0 0.0
    %806 = vmatpush1.xpose.msra.mxu0 0.0
    %807 = vmatprep.subr.mxu0 0.0
    %808 = vmatpush1.xpose.msra.mxu0 0.0
    %809 = vmatprep.subr.mxu0 0.0
    %810 = vmatpush1.xpose.msra.mxu0 0.0
    %811 = vmatprep.subr.mxu0 0.0
    %812 = vmatpush1.xpose.msra.mxu0 0.0
    %813 = vmatprep.subr.mxu0 0.0
    %814 = vmatpush1.xpose.msra.mxu0 0.0
    %815 = vmatprep.subr.mxu0 0.0
    %816 = vmatpush1.xpose.msra.mxu0 0.0
    %817 = vmatprep.subr.mxu0 0.0
    %818 = vmatpush1.xpose.msra.mxu0 0.0
    %819 = vmatprep.subr.mxu0 0.0
    %820 = vmatpush1.xpose.msra.mxu0 0.0
    %821 = vmatprep.subr.mxu0 0.0
    %822 = vmatpush1.xpose.msra.mxu0 0.0
    %823 = vmatprep.subr.mxu0 0.0
    %824 = vmatpush1.xpose.msra.mxu0 0.0
    %825 = vmatprep.subr.mxu0 0.0
    %826 = vmatpush1.xpose.msra.mxu0 0.0
    %827 = vmatprep.subr.mxu0 0.0
    %828 = vmatpush1.xpose.msra.mxu0 0.0
    %829 = vmatprep.subr.mxu0 0.0
    %830 = vmatpush1.xpose.msra.mxu0 0.0
    %831 = vmatprep.subr.mxu0 0.0
    %832 = vmatpush1.xpose.msra.mxu0 0.0
    %833 = vmatprep.mubr.f32.mxu0 0.0
    %834 = vmatmul.mubr.f32.gmra.mrb[0].mxu0 %v761
    %v835 = vpop.f32.mrb[0].mxu0
    %v836 = vadd.f32 0.0, %v835
    %v837 = vpop.f32.mrb[0].mxu0
    %838 = vmatprep.mubr.f32.mxu0 0.0
    %839 = vmatmul.mubr.f32.gmra.mrb[0].mxu0 %v763
    %v840 = vpop.f32.mrb[0].mxu0
    %v841 = vadd.f32 0.0, %v840
    %v842 = vpop.f32.mrb[0].mxu0
    %843 = vdwg.mxu0
    %v844 = vsel %vm181, %v836, -1e+30
    %v845 = vsel %vm182, %v841, -1e+30
    %v846 = vsel %vm279, %v844, -inf
    %847 = vmax.xlane.f32.xlu0 %v846
    %v848 = vpop.xlane.xlu0 %847
    %v849 = vsel %vm279, %v845, -inf
    %850 = vmax.xlane.f32.xlu0 %v849
    %v851 = vpop.xlane.xlu0 %850
    %v852 = vsub.f32 %v844, %v848
    %v853 = vsub.f32 %v845, %v851
    %v854 = vmul.f32 %v852, 1.442695
    %v855 = vpow.pop %v854
    %v856 = vmul.f32 %v853, 1.442695
    %v857 = vpow.pop %v856
    %v858 = vsel %vm279, %v855, 0.0
    %859 = vadd.xlane.f32.xlu0 %v858
    %v860 = vpop.xlane.xlu0 %859
    %v861 = vsel %vm279, %v857, 0.0
    %862 = vadd.xlane.f32.xlu0 %v861
    %v863 = vpop.xlane.xlu0 %862
    %v864 = vrcp.pop %v860
    %v865 = vmul.f32 %v855, %v864
    %v866 = vrcp.pop %v863
    %v867 = vmul.f32 %v857, %v866
    %868 = vrot.lane.b32.xlu0 %v132, 48
    %v869 = vpop.permute.xlu0 %868
    %870 = vrot.lane.b32.xlu0 %v137, 48
    %v871 = vpop.permute.xlu0 %870
    %v875 = vsel %vm279, %v865, 0
    %v878 = vsel %vm279, %v867, 0
    %880 = vmatprep.subr.mxu0 0.0
    %881 = vmatpush1.msra.mxu0 %v869
    %882 = vmatprep.subr.mxu0 0.0
    %883 = vmatpush1.msra.mxu0 %v871
    %884 = vmatprep.subr.mxu0 0.0
    %885 = vmatpush1.msra.mxu0 0.0
    %886 = vmatprep.subr.mxu0 0.0
    %887 = vmatpush1.msra.mxu0 0.0
    %888 = vmatprep.subr.mxu0 0.0
    %889 = vmatpush1.msra.mxu0 0.0
    %890 = vmatprep.subr.mxu0 0.0
    %891 = vmatpush1.msra.mxu0 0.0
    %892 = vmatprep.subr.mxu0 0.0
    %893 = vmatpush1.msra.mxu0 0.0
    %894 = vmatprep.subr.mxu0 0.0
    %895 = vmatpush1.msra.mxu0 0.0
    %896 = vmatprep.subr.mxu0 0.0
    %897 = vmatpush1.msra.mxu0 0.0
    %898 = vmatprep.subr.mxu0 0.0
    %899 = vmatpush1.msra.mxu0 0.0
    %900 = vmatprep.subr.mxu0 0.0
    %901 = vmatpush1.msra.mxu0 0.0
    %902 = vmatprep.subr.mxu0 0.0
    %903 = vmatpush1.msra.mxu0 0.0
    %904 = vmatprep.subr.mxu0 0.0
    %905 = vmatpush1.msra.mxu0 0.0
    %906 = vmatprep.subr.mxu0 0.0
    %907 = vmatpush1.msra.mxu0 0.0
    %908 = vmatprep.subr.mxu0 0.0
    %909 = vmatpush1.msra.mxu0 0.0
    %910 = vmatprep.subr.mxu0 0.0
    %911 = vmatpush1.msra.mxu0 0.0
    %912 = vmatprep.subr.mxu0 0.0
    %913 = vmatpush1.msra.mxu0 0.0
    %914 = vmatprep.subr.mxu0 0.0
    %915 = vmatpush1.msra.mxu0 0.0
    %916 = vmatprep.subr.mxu0 0.0
    %917 = vmatpush1.msra.mxu0 0.0
    %918 = vmatprep.subr.mxu0 0.0
    %919 = vmatpush1.msra.mxu0 0.0
    %920 = vmatprep.subr.mxu0 0.0
    %921 = vmatpush1.msra.mxu0 0.0
    %922 = vmatprep.subr.mxu0 0.0
    %923 = vmatpush1.msra.mxu0 0.0
    %924 = vmatprep.subr.mxu0 0.0
    %925 = vmatpush1.msra.mxu0 0.0
    %926 = vmatprep.subr.mxu0 0.0
    %927 = vmatpush1.msra.mxu0 0.0
    %928 = vmatprep.subr.mxu0 0.0
    %929 = vmatpush1.msra.mxu0 0.0
    %930 = vmatprep.subr.mxu0 0.0
    %931 = vmatpush1.msra.mxu0 0.0
    %932 = vmatprep.subr.mxu0 0.0
    %933 = vmatpush1.msra.mxu0 0.0
    %934 = vmatprep.subr.mxu0 0.0
    %935 = vmatpush1.msra.mxu0 0.0
    %936 = vmatprep.subr.mxu0 0.0
    %937 = vmatpush1.msra.mxu0 0.0
    %938 = vmatprep.subr.mxu0 0.0
    %939 = vmatpush1.msra.mxu0 0.0
    %940 = vmatprep.subr.mxu0 0.0
    %941 = vmatpush1.msra.mxu0 0.0
    %942 = vmatprep.subr.mxu0 0.0
    %943 = vmatpush1.msra.mxu0 0.0
    %944 = vmatprep.mubr.f32.mxu0 0.0
    %945 = vmatmul.mubr.f32.gmra.mrb[0].mxu0 %v875
    %v946 = vpop.f32.mrb[0].mxu0
    %v947 = vadd.f32 0.0, %v946
    %v948 = vpop.f32.mrb[0].mxu0
    %949 = vmatprep.mubr.f32.mxu0 0.0
    %950 = vmatmul.mubr.f32.gmra.mrb[0].mxu0 %v878
    %v951 = vpop.f32.mrb[0].mxu0
    %v952 = vadd.f32 0.0, %v951
    %v953 = vpop.f32.mrb[0].mxu0
    %954 = vdwg.mxu0
    %v956 = vsel %vm193, %v947, 0
    %v959 = vsel %vm193, %v952, 0
    %961 = vmatprep.subr.mxu0 0.0
    %962 = vmatpush1.msra.mxu0 %v185
    %963 = vmatprep.subr.mxu0 0.0
    %964 = vmatpush1.msra.mxu0 0.0
    %965 = vmatprep.subr.mxu0 0.0
    %966 = vmatpush1.msra.mxu0 0.0
    %967 = vmatprep.subr.mxu0 0.0
    %968 = vmatpush1.msra.mxu0 0.0
    %969 = vmatprep.subr.mxu0 0.0
    %970 = vmatpush1.msra.mxu0 0.0
    %971 = vmatprep.subr.mxu0 0.0
    %972 = vmatpush1.msra.mxu0 0.0
    %973 = vmatprep.subr.mxu0 0.0
    %974 = vmatpush1.msra.mxu0 0.0
    %975 = vmatprep.subr.mxu0 0.0
    %976 = vmatpush1.msra.mxu0 0.0
    %977 = vmatprep.subr.mxu0 0.0
    %978 = vmatpush1.msra.mxu0 0.0
    %979 = vmatprep.subr.mxu0 0.0
    %980 = vmatpush1.msra.mxu0 0.0
    %981 = vmatprep.subr.mxu0 0.0
    %982 = vmatpush1.msra.mxu0 0.0
    %983 = vmatprep.subr.mxu0 0.0
    %984 = vmatpush1.msra.mxu0 0.0
    %985 = vmatprep.subr.mxu0 0.0
    %986 = vmatpush1.msra.mxu0 0.0
    %987 = vmatprep.subr.mxu0 0.0
    %988 = vmatpush1.msra.mxu0 0.0
    %989 = vmatprep.subr.mxu0 0.0
    %990 = vmatpush1.msra.mxu0 0.0
    %991 = vmatprep.subr.mxu0 0.0
    %992 = vmatpush1.msra.mxu0 0.0
    %993 = vmatprep.subr.mxu0 0.0
    %994 = vmatpush1.msra.mxu0 0.0
    %995 = vmatprep.subr.mxu0 0.0
    %996 = vmatpush1.msra.mxu0 0.0
    %997 = vmatprep.subr.mxu0 0.0
    %998 = vmatpush1.msra.mxu0 0.0
    %999 = vmatprep.subr.mxu0 0.0
    %1000 = vmatpush1.msra.mxu0 0.0
    %1001 = vmatprep.subr.mxu0 0.0
    %1002 = vmatpush1.msra.mxu0 0.0
    %1003 = vmatprep.subr.mxu0 0.0
    %1004 = vmatpush1.msra.mxu0 0.0
    %1005 = vmatprep.subr.mxu0 0.0
    %1006 = vmatpush1.msra.mxu0 0.0
    %1007 = vmatprep.subr.mxu0 0.0
    %1008 = vmatpush1.msra.mxu0 0.0
    %1009 = vmatprep.subr.mxu0 0.0
    %1010 = vmatpush1.msra.mxu0 0.0
    %1011 = vmatprep.subr.mxu0 0.0
    %1012 = vmatpush1.msra.mxu0 0.0
    %1013 = vmatprep.subr.mxu0 0.0
    %1014 = vmatpush1.msra.mxu0 0.0
    %1015 = vmatprep.subr.mxu0 0.0
    %1016 = vmatpush1.msra.mxu0 0.0
    %1017 = vmatprep.subr.mxu0 0.0
    %1018 = vmatpush1.msra.mxu0 0.0
    %1019 = vmatprep.subr.mxu0 0.0
    %1020 = vmatpush1.msra.mxu0 0.0
    %1021 = vmatprep.subr.mxu0 0.0
    %1022 = vmatpush1.msra.mxu0 0.0
    %1023 = vmatprep.subr.mxu0 0.0
    %1024 = vmatpush1.msra.mxu0 0.0
    %1025 = vmatprep.mubr.f32.mxu0 0.0
    %1026 = vmatmul.mubr.f32.gmra.mrb[0].mxu0 %v956
    %v1027 = vpop.f32.mrb[0].mxu0
    %v1028 = vadd.f32 0.0, %v1027
    %v1029 = vpop.f32.mrb[0].mxu0
    %1030 = vmatprep.mubr.f32.mxu0 0.0
    %1031 = vmatmul.mubr.f32.gmra.mrb[0].mxu0 %v959
    %v1032 = vpop.f32.mrb[0].mxu0
    %v1033 = vadd.f32 0.0, %v1032
    %v1034 = vpop.f32.mrb[0].mxu0
    %1035 = vdwg.mxu0
    %v1036 = vadd.f32 %v745, %v1028
    %v1037 = vadd.f32 %v750, %v1033
    %1038 = vrot.lane.b32.xlu0 %v132, 104
    %v1039 = vpop.permute.xlu0 %1038
    %1040 = vrot.lane.b32.xlu0 %v137, 104
    %v1041 = vpop.permute.xlu0 %1040
    %1042 = vrot.lane.b32.xlu0 %v132, 72
    %v1043 = vpop.permute.xlu0 %1042
    %1044 = vrot.lane.b32.xlu0 %v137, 72
    %v1045 = vpop.permute.xlu0 %1044
    %v1046 = vsel %vm193, %v1039, 0
    %v1048 = vsel %vm193, %v1041, 0
    %v1050 = vsel %vm193, %v1043, 0
    %v1052 = vsel %vm193, %v1045, 0
    %1054 = vmatprep.subr.mxu0 0.0
    %1055 = vmatpush1.xpose.msra.mxu0 %v1050
    %1056 = vmatprep.subr.mxu0 0.0
    %1057 = vmatpush1.xpose.msra.mxu0 %v1052
    %1058 = vmatprep.subr.mxu0 0.0
    %1059 = vmatpush1.xpose.msra.mxu0 0.0
    %1060 = vmatprep.subr.mxu0 0.0
    %1061 = vmatpush1.xpose.msra.mxu0 0.0
    %1062 = vmatprep.subr.mxu0 0.0
    %1063 = vmatpush1.xpose.msra.mxu0 0.0
    %1064 = vmatprep.subr.mxu0 0.0
    %1065 = vmatpush1.xpose.msra.mxu0 0.0
    %1066 = vmatprep.subr.mxu0 0.0
    %1067 = vmatpush1.xpose.msra.mxu0 0.0
    %1068 = vmatprep.subr.mxu0 0.0
    %1069 = vmatpush1.xpose.msra.mxu0 0.0
    %1070 = vmatprep.subr.mxu0 0.0
    %1071 = vmatpush1.xpose.msra.mxu0 0.0
    %1072 = vmatprep.subr.mxu0 0.0
    %1073 = vmatpush1.xpose.msra.mxu0 0.0
    %1074 = vmatprep.subr.mxu0 0.0
    %1075 = vmatpush1.xpose.msra.mxu0 0.0
    %1076 = vmatprep.subr.mxu0 0.0
    %1077 = vmatpush1.xpose.msra.mxu0 0.0
    %1078 = vmatprep.subr.mxu0 0.0
    %1079 = vmatpush1.xpose.msra.mxu0 0.0
    %1080 = vmatprep.subr.mxu0 0.0
    %1081 = vmatpush1.xpose.msra.mxu0 0.0
    %1082 = vmatprep.subr.mxu0 0.0
    %1083 = vmatpush1.xpose.msra.mxu0 0.0
    %1084 = vmatprep.subr.mxu0 0.0
    %1085 = vmatpush1.xpose.msra.mxu0 0.0
    %1086 = vmatprep.subr.mxu0 0.0
    %1087 = vmatpush1.xpose.msra.mxu0 0.0
    %1088 = vmatprep.subr.mxu0 0.0
    %1089 = vmatpush1.xpose.msra.mxu0 0.0
    %1090 = vmatprep.subr.mxu0 0.0
    %1091 = vmatpush1.xpose.msra.mxu0 0.0
    %1092 = vmatprep.subr.mxu0 0.0
    %1093 = vmatpush1.xpose.msra.mxu0 0.0
    %1094 = vmatprep.subr.mxu0 0.0
    %1095 = vmatpush1.xpose.msra.mxu0 0.0
    %1096 = vmatprep.subr.mxu0 0.0
    %1097 = vmatpush1.xpose.msra.mxu0 0.0
    %1098 = vmatprep.subr.mxu0 0.0
    %1099 = vmatpush1.xpose.msra.mxu0 0.0
    %1100 = vmatprep.subr.mxu0 0.0
    %1101 = vmatpush1.xpose.msra.mxu0 0.0
    %1102 = vmatprep.subr.mxu0 0.0
    %1103 = vmatpush1.xpose.msra.mxu0 0.0
    %1104 = vmatprep.subr.mxu0 0.0
    %1105 = vmatpush1.xpose.msra.mxu0 0.0
    %1106 = vmatprep.subr.mxu0 0.0
    %1107 = vmatpush1.xpose.msra.mxu0 0.0
    %1108 = vmatprep.subr.mxu0 0.0
    %1109 = vmatpush1.xpose.msra.mxu0 0.0
    %1110 = vmatprep.subr.mxu0 0.0
    %1111 = vmatpush1.xpose.msra.mxu0 0.0
    %1112 = vmatprep.subr.mxu0 0.0
    %1113 = vmatpush1.xpose.msra.mxu0 0.0
    %1114 = vmatprep.subr.mxu0 0.0
    %1115 = vmatpush1.xpose.msra.mxu0 0.0
    %1116 = vmatprep.subr.mxu0 0.0
    %1117 = vmatpush1.xpose.msra.mxu0 0.0
    %1118 = vmatprep.mubr.f32.mxu0 0.0
    %1119 = vmatmul.mubr.f32.gmra.mrb[0].mxu0 %v1046
    %v1120 = vpop.f32.mrb[0].mxu0
    %v1121 = vadd.f32 0.0, %v1120
    %v1122 = vpop.f32.mrb[0].mxu0
    %1123 = vmatprep.mubr.f32.mxu0 0.0
    %1124 = vmatmul.mubr.f32.gmra.mrb[0].mxu0 %v1048
    %v1125 = vpop.f32.mrb[0].mxu0
    %v1126 = vadd.f32 0.0, %v1125
    %v1127 = vpop.f32.mrb[0].mxu0
    %1128 = vdwg.mxu0
    %v1129 = vsel %vm181, %v1121, -1e+30
    %v1130 = vsel %vm182, %v1126, -1e+30
    %v1131 = vsel %vm279, %v1129, -inf
    %1132 = vmax.xlane.f32.xlu0 %v1131
    %v1133 = vpop.xlane.xlu0 %1132
    %v1134 = vsel %vm279, %v1130, -inf
    %1135 = vmax.xlane.f32.xlu0 %v1134
    %v1136 = vpop.xlane.xlu0 %1135
    %v1137 = vsub.f32 %v1129, %v1133
    %v1138 = vsub.f32 %v1130, %v1136
    %v1139 = vmul.f32 %v1137, 1.442695
    %v1140 = vpow.pop %v1139
    %v1141 = vmul.f32 %v1138, 1.442695
    %v1142 = vpow.pop %v1141
    %v1143 = vsel %vm279, %v1140, 0.0
    %1144 = vadd.xlane.f32.xlu0 %v1143
    %v1145 = vpop.xlane.xlu0 %1144
    %v1146 = vsel %vm279, %v1142, 0.0
    %1147 = vadd.xlane.f32.xlu0 %v1146
    %v1148 = vpop.xlane.xlu0 %1147
    %v1149 = vrcp.pop %v1145
    %v1150 = vmul.f32 %v1140, %v1149
    %v1151 = vrcp.pop %v1148
    %v1152 = vmul.f32 %v1142, %v1151
    %1153 = vrot.lane.b32.xlu0 %v132, 40
    %v1154 = vpop.permute.xlu0 %1153
    %1155 = vrot.lane.b32.xlu0 %v137, 40
    %v1156 = vpop.permute.xlu0 %1155
    %v1160 = vsel %vm279, %v1150, 0
    %v1163 = vsel %vm279, %v1152, 0
    %1165 = vmatprep.subr.mxu0 0.0
    %1166 = vmatpush1.msra.mxu0 %v1154
    %1167 = vmatprep.subr.mxu0 0.0
    %1168 = vmatpush1.msra.mxu0 %v1156
    %1169 = vmatprep.subr.mxu0 0.0
    %1170 = vmatpush1.msra.mxu0 0.0
    %1171 = vmatprep.subr.mxu0 0.0
    %1172 = vmatpush1.msra.mxu0 0.0
    %1173 = vmatprep.subr.mxu0 0.0
    %1174 = vmatpush1.msra.mxu0 0.0
    %1175 = vmatprep.subr.mxu0 0.0
    %1176 = vmatpush1.msra.mxu0 0.0
    %1177 = vmatprep.subr.mxu0 0.0
    %1178 = vmatpush1.msra.mxu0 0.0
    %1179 = vmatprep.subr.mxu0 0.0
    %1180 = vmatpush1.msra.mxu0 0.0
    %1181 = vmatprep.subr.mxu0 0.0
    %1182 = vmatpush1.msra.mxu0 0.0
    %1183 = vmatprep.subr.mxu0 0.0
    %1184 = vmatpush1.msra.mxu0 0.0
    %1185 = vmatprep.subr.mxu0 0.0
    %1186 = vmatpush1.msra.mxu0 0.0
    %1187 = vmatprep.subr.mxu0 0.0
    %1188 = vmatpush1.msra.mxu0 0.0
    %1189 = vmatprep.subr.mxu0 0.0
    %1190 = vmatpush1.msra.mxu0 0.0
    %1191 = vmatprep.subr.mxu0 0.0
    %1192 = vmatpush1.msra.mxu0 0.0
    %1193 = vmatprep.subr.mxu0 0.0
    %1194 = vmatpush1.msra.mxu0 0.0
    %1195 = vmatprep.subr.mxu0 0.0
    %1196 = vmatpush1.msra.mxu0 0.0
    %1197 = vmatprep.subr.mxu0 0.0
    %1198 = vmatpush1.msra.mxu0 0.0
    %1199 = vmatprep.subr.mxu0 0.0
    %1200 = vmatpush1.msra.mxu0 0.0
    %1201 = vmatprep.subr.mxu0 0.0
    %1202 = vmatpush1.msra.mxu0 0.0
    %1203 = vmatprep.subr.mxu0 0.0
    %1204 = vmatpush1.msra.mxu0 0.0
    %1205 = vmatprep.subr.mxu0 0.0
    %1206 = vmatpush1.msra.mxu0 0.0
    %1207 = vmatprep.subr.mxu0 0.0
    %1208 = vmatpush1.msra.mxu0 0.0
    %1209 = vmatprep.subr.mxu0 0.0
    %1210 = vmatpush1.msra.mxu0 0.0
    %1211 = vmatprep.subr.mxu0 0.0
    %1212 = vmatpush1.msra.mxu0 0.0
    %1213 = vmatprep.subr.mxu0 0.0
    %1214 = vmatpush1.msra.mxu0 0.0
    %1215 = vmatprep.subr.mxu0 0.0
    %1216 = vmatpush1.msra.mxu0 0.0
    %1217 = vmatprep.subr.mxu0 0.0
    %1218 = vmatpush1.msra.mxu0 0.0
    %1219 = vmatprep.subr.mxu0 0.0
    %1220 = vmatpush1.msra.mxu0 0.0
    %1221 = vmatprep.subr.mxu0 0.0
    %1222 = vmatpush1.msra.mxu0 0.0
    %1223 = vmatprep.subr.mxu0 0.0
    %1224 = vmatpush1.msra.mxu0 0.0
    %1225 = vmatprep.subr.mxu0 0.0
    %1226 = vmatpush1.msra.mxu0 0.0
    %1227 = vmatprep.subr.mxu0 0.0
    %1228 = vmatpush1.msra.mxu0 0.0
    %1229 = vmatprep.mubr.f32.mxu0 0.0
    %1230 = vmatmul.mubr.f32.gmra.mrb[0].mxu0 %v1160
    %v1231 = vpop.f32.mrb[0].mxu0
    %v1232 = vadd.f32 0.0, %v1231
    %v1233 = vpop.f32.mrb[0].mxu0
    %1234 = vmatprep.mubr.f32.mxu0 0.0
    %1235 = vmatmul.mubr.f32.gmra.mrb[0].mxu0 %v1163
    %v1236 = vpop.f32.mrb[0].mxu0
    %v1237 = vadd.f32 0.0, %v1236
    %v1238 = vpop.f32.mrb[0].mxu0
    %1239 = vdwg.mxu0
    %v1241 = vsel %vm193, %v1232, 0
    %v1244 = vsel %vm193, %v1237, 0
    %1246 = vmatprep.subr.mxu0 0.0
    %1247 = vmatpush1.msra.mxu0 %v186
    %1248 = vmatprep.subr.mxu0 0.0
    %1249 = vmatpush1.msra.mxu0 0.0
    %1250 = vmatprep.subr.mxu0 0.0
    %1251 = vmatpush1.msra.mxu0 0.0
    %1252 = vmatprep.subr.mxu0 0.0
    %1253 = vmatpush1.msra.mxu0 0.0
    %1254 = vmatprep.subr.mxu0 0.0
    %1255 = vmatpush1.msra.mxu0 0.0
    %1256 = vmatprep.subr.mxu0 0.0
    %1257 = vmatpush1.msra.mxu0 0.0
    %1258 = vmatprep.subr.mxu0 0.0
    %1259 = vmatpush1.msra.mxu0 0.0
    %1260 = vmatprep.subr.mxu0 0.0
    %1261 = vmatpush1.msra.mxu0 0.0
    %1262 = vmatprep.subr.mxu0 0.0
    %1263 = vmatpush1.msra.mxu0 0.0
    %1264 = vmatprep.subr.mxu0 0.0
    %1265 = vmatpush1.msra.mxu0 0.0
    %1266 = vmatprep.subr.mxu0 0.0
    %1267 = vmatpush1.msra.mxu0 0.0
    %1268 = vmatprep.subr.mxu0 0.0
    %1269 = vmatpush1.msra.mxu0 0.0
    %1270 = vmatprep.subr.mxu0 0.0
    %1271 = vmatpush1.msra.mxu0 0.0
    %1272 = vmatprep.subr.mxu0 0.0
    %1273 = vmatpush1.msra.mxu0 0.0
    %1274 = vmatprep.subr.mxu0 0.0
    %1275 = vmatpush1.msra.mxu0 0.0
    %1276 = vmatprep.subr.mxu0 0.0
    %1277 = vmatpush1.msra.mxu0 0.0
    %1278 = vmatprep.subr.mxu0 0.0
    %1279 = vmatpush1.msra.mxu0 0.0
    %1280 = vmatprep.subr.mxu0 0.0
    %1281 = vmatpush1.msra.mxu0 0.0
    %1282 = vmatprep.subr.mxu0 0.0
    %1283 = vmatpush1.msra.mxu0 0.0
    %1284 = vmatprep.subr.mxu0 0.0
    %1285 = vmatpush1.msra.mxu0 0.0
    %1286 = vmatprep.subr.mxu0 0.0
    %1287 = vmatpush1.msra.mxu0 0.0
    %1288 = vmatprep.subr.mxu0 0.0
    %1289 = vmatpush1.msra.mxu0 0.0
    %1290 = vmatprep.subr.mxu0 0.0
    %1291 = vmatpush1.msra.mxu0 0.0
    %1292 = vmatprep.subr.mxu0 0.0
    %1293 = vmatpush1.msra.mxu0 0.0
    %1294 = vmatprep.subr.mxu0 0.0
    %1295 = vmatpush1.msra.mxu0 0.0
    %1296 = vmatprep.subr.mxu0 0.0
    %1297 = vmatpush1.msra.mxu0 0.0
    %1298 = vmatprep.subr.mxu0 0.0
    %1299 = vmatpush1.msra.mxu0 0.0
    %1300 = vmatprep.subr.mxu0 0.0
    %1301 = vmatpush1.msra.mxu0 0.0
    %1302 = vmatprep.subr.mxu0 0.0
    %1303 = vmatpush1.msra.mxu0 0.0
    %1304 = vmatprep.subr.mxu0 0.0
    %1305 = vmatpush1.msra.mxu0 0.0
    %1306 = vmatprep.subr.mxu0 0.0
    %1307 = vmatpush1.msra.mxu0 0.0
    %1308 = vmatprep.subr.mxu0 0.0
    %1309 = vmatpush1.msra.mxu0 0.0
    %1310 = vmatprep.mubr.f32.mxu0 0.0
    %1311 = vmatmul.mubr.f32.gmra.mrb[0].mxu0 %v1241
    %v1312 = vpop.f32.mrb[0].mxu0
    %v1313 = vadd.f32 0.0, %v1312
    %v1314 = vpop.f32.mrb[0].mxu0
    %1315 = vmatprep.mubr.f32.mxu0 0.0
    %1316 = vmatmul.mubr.f32.gmra.mrb[0].mxu0 %v1244
    %v1317 = vpop.f32.mrb[0].mxu0
    %v1318 = vadd.f32 0.0, %v1317
    %v1319 = vpop.f32.mrb[0].mxu0
    %1320 = vdwg.mxu0
    %v1321 = vadd.f32 %v1036, %v1313
    %v1322 = vadd.f32 %v1037, %v1318
    %v1323 = vlaneseq
    %v1324 = vshrl.u32 %v1323, 7
    %v1325 = vsub.s32 0, %v1324
    %v1326 = vrot.slane %v46, %v1325
    %v1327 = vadd.f32 %v1321, %v1326
    %v1328 = vadd.f32 %v1322, %v1326
    %v1329 = vadd.f32 %v44, %v1327
    %v1330 = vadd.f32 %v45, %v1328
    %v1331 = vsel %vm58, %v1329, 0.0
    %1332 = vadd.xlane.f32.xlu0 %v1331
    %v1333 = vpop.xlane.xlu0 %1332
    %v1334 = vsel %vm58, %v1330, 0.0
    %1335 = vadd.xlane.f32.xlu0 %v1334
    %v1336 = vpop.xlane.xlu0 %1335
    %v1337 = vrcp.pop 32.0
    %v1338 = vmul.f32 %v1333, %v1337
    %v1339 = vmul.f32 %v1336, %v1337
    %v1340 = vsub.f32 %v1329, %v1338
    %v1341 = vsub.f32 %v1330, %v1339
    %v1342 = vmul.f32 %v1340, %v1340
    %v1343 = vmul.f32 %v1341, %v1341
    %v1344 = vsel %vm58, %v1342, 0.0
    %1345 = vadd.xlane.f32.xlu0 %v1344
    %v1346 = vpop.xlane.xlu0 %1345
    %v1347 = vsel %vm58, %v1343, 0.0
    %1348 = vadd.xlane.f32.xlu0 %v1347
    %v1349 = vpop.xlane.xlu0 %1348
    %v1350 = vmul.f32 %v1346, %v1337
    %v1351 = vmul.f32 %v1349, %v1337
    %v1352 = vadd.f32 %v1350, 1e-05
    %v1353 = vadd.f32 %v1351, 1e-05
    %v1354 = vrsqrt.pop %v1352
    %v1355 = vrsqrt.pop %v1353
    %v1356 = vmul.f32 %v1340, %v1354
    %v1357 = vmul.f32 %v1341, %v1355
    %v1358 = vlaneseq
    %v1359 = vshrl.u32 %v1358, 7
    %v1360 = vsub.s32 1, %v1359
    %v1361 = vrot.slane %v46, %v1360
    %v1362 = vmul.f32 %v1356, %v1361
    %v1363 = vmul.f32 %v1357, %v1361
    %v1364 = vlaneseq
    %v1365 = vshrl.u32 %v1364, 7
    %v1366 = vsub.s32 2, %v1365
    %v1367 = vrot.slane %v46, %v1366
    %v1368 = vadd.f32 %v1362, %v1367
    %v1369 = vadd.f32 %v1363, %v1367
    %v1370 = vld [vmem:[%s4] sm:$0xff]
    %v1371 = vld [vmem:[%s4 + $0x8] sm:$0xff]
    %v1372 = vld [vmem:[%s4 + $0x10] sm:$0xff]
    %v1373 = vld [vmem:[%s4 + $0x18] sm:$0xff]
    %v1374 = vld [vmem:[%s5] sm:$0x1]
    %v1376 = vlaneseq
    %v1377 = vshrl.u32 %v1376, 7
    %v1378 = vsub.s32 0, %v1377
    %v1379 = vrot.slane %v1374, %v1378
    %v1382 = vsel %vm58, %v1368, 0
    %v1385 = vsel %vm58, %v1369, 0
    %1387 = vmatprep.subr.mxu0 0.0
    %1388 = vmatpush1.msra.mxu0 %v1370
    %1389 = vmatprep.subr.mxu0 0.0
    %1390 = vmatpush1.msra.mxu0 %v1371
    %1391 = vmatprep.subr.mxu0 0.0
    %1392 = vmatpush1.msra.mxu0 %v1372
    %1393 = vmatprep.subr.mxu0 0.0
    %1394 = vmatpush1.msra.mxu0 %v1373
    %1395 = vmatprep.subr.mxu0 0.0
    %1396 = vmatpush1.msra.mxu0 0.0
    %1397 = vmatprep.subr.mxu0 0.0
    %1398 = vmatpush1.msra.mxu0 0.0
    %1399 = vmatprep.subr.mxu0 0.0
    %1400 = vmatpush1.msra.mxu0 0.0
    %1401 = vmatprep.subr.mxu0 0.0
    %1402 = vmatpush1.msra.mxu0 0.0
    %1403 = vmatprep.subr.mxu0 0.0
    %1404 = vmatpush1.msra.mxu0 0.0
    %1405 = vmatprep.subr.mxu0 0.0
    %1406 = vmatpush1.msra.mxu0 0.0
    %1407 = vmatprep.subr.mxu0 0.0
    %1408 = vmatpush1.msra.mxu0 0.0
    %1409 = vmatprep.subr.mxu0 0.0
    %1410 = vmatpush1.msra.mxu0 0.0
    %1411 = vmatprep.subr.mxu0 0.0
    %1412 = vmatpush1.msra.mxu0 0.0
    %1413 = vmatprep.subr.mxu0 0.0
    %1414 = vmatpush1.msra.mxu0 0.0
    %1415 = vmatprep.subr.mxu0 0.0
    %1416 = vmatpush1.msra.mxu0 0.0
    %1417 = vmatprep.subr.mxu0 0.0
    %1418 = vmatpush1.msra.mxu0 0.0
    %1419 = vmatprep.subr.mxu0 0.0
    %1420 = vmatpush1.msra.mxu0 0.0
    %1421 = vmatprep.subr.mxu0 0.0
    %1422 = vmatpush1.msra.mxu0 0.0
    %1423 = vmatprep.subr.mxu0 0.0
    %1424 = vmatpush1.msra.mxu0 0.0
    %1425 = vmatprep.subr.mxu0 0.0
    %1426 = vmatpush1.msra.mxu0 0.0
    %1427 = vmatprep.subr.mxu0 0.0
    %1428 = vmatpush1.msra.mxu0 0.0
    %1429 = vmatprep.subr.mxu0 0.0
    %1430 = vmatpush1.msra.mxu0 0.0
    %1431 = vmatprep.subr.mxu0 0.0
    %1432 = vmatpush1.msra.mxu0 0.0
    %1433 = vmatprep.subr.mxu0 0.0
    %1434 = vmatpush1.msra.mxu0 0.0
    %1435 = vmatprep.subr.mxu0 0.0
    %1436 = vmatpush1.msra.mxu0 0.0
    %1437 = vmatprep.subr.mxu0 0.0
    %1438 = vmatpush1.msra.mxu0 0.0
    %1439 = vmatprep.subr.mxu0 0.0
    %1440 = vmatpush1.msra.mxu0 0.0
    %1441 = vmatprep.subr.mxu0 0.0
    %1442 = vmatpush1.msra.mxu0 0.0
    %1443 = vmatprep.subr.mxu0 0.0
    %1444 = vmatpush1.msra.mxu0 0.0
    %1445 = vmatprep.subr.mxu0 0.0
    %1446 = vmatpush1.msra.mxu0 0.0
    %1447 = vmatprep.subr.mxu0 0.0
    %1448 = vmatpush1.msra.mxu0 0.0
    %1449 = vmatprep.subr.mxu0 0.0
    %1450 = vmatpush1.msra.mxu0 0.0
    %1451 = vmatprep.mubr.f32.mxu0 0.0
    %1452 = vmatmul.mubr.f32.gmra.mrb[0].mxu0 %v1382
    %v1453 = vpop.f32.mrb[0].mxu0
    %v1454 = vadd.f32 %v1379, %v1453
    %v1455 = vpop.f32.mrb[0].mxu0
    %1456 = vmatprep.mubr.f32.mxu0 0.0
    %1457 = vmatmul.mubr.f32.gmra.mrb[0].mxu0 %v1385
    %v1458 = vpop.f32.mrb[0].mxu0
    %v1459 = vadd.f32 %v1379, %v1458
    %v1460 = vpop.f32.mrb[0].mxu0
    %1461 = vdwg.mxu0
    %v1462 = vmax.f32 %v1454, 0.0
    %v1463 = vmax.f32 %v1459, 0.0
    %v1464 = vld [vmem:[%s6] sm:$0xff]
    %v1465 = vld [vmem:[%s6 + $0x8] sm:$0xff]
    %v1466 = vld [vmem:[%s6 + $0x10] sm:$0xff]
    %v1467 = vld [vmem:[%s6 + $0x18] sm:$0xff]
    %v1468 = vld [vmem:[%s6 + $0x20] sm:$0xff]
    %v1469 = vld [vmem:[%s6 + $0x28] sm:$0xff]
    %v1470 = vld [vmem:[%s6 + $0x30] sm:$0xff]
    %v1471 = vld [vmem:[%s6 + $0x38] sm:$0xff]
    %v1472 = vlaneseq
    %v1473 = vshrl.u32 %v1472, 7
    %v1474 = vsub.s32 3, %v1473
    %v1475 = vrot.slane %v46, %v1474
    %vm1476 = vcmask 523264
    %v1478 = vsel %vm1476, %v1462, 0
    %v1481 = vsel %vm1476, %v1463, 0
    %1483 = vmatprep.subr.mxu0 0.0
    %1484 = vmatpush1.msra.mxu0 %v1464
    %1485 = vmatprep.subr.mxu0 0.0
    %1486 = vmatpush1.msra.mxu0 %v1465
    %1487 = vmatprep.subr.mxu0 0.0
    %1488 = vmatpush1.msra.mxu0 %v1466
    %1489 = vmatprep.subr.mxu0 0.0
    %1490 = vmatpush1.msra.mxu0 %v1467
    %1491 = vmatprep.subr.mxu0 0.0
    %1492 = vmatpush1.msra.mxu0 %v1468
    %1493 = vmatprep.subr.mxu0 0.0
    %1494 = vmatpush1.msra.mxu0 %v1469
    %1495 = vmatprep.subr.mxu0 0.0
    %1496 = vmatpush1.msra.mxu0 %v1470
    %1497 = vmatprep.subr.mxu0 0.0
    %1498 = vmatpush1.msra.mxu0 %v1471
    %1499 = vmatprep.subr.mxu0 0.0
    %1500 = vmatpush1.msra.mxu0 0.0
    %1501 = vmatprep.subr.mxu0 0.0
    %1502 = vmatpush1.msra.mxu0 0.0
    %1503 = vmatprep.subr.mxu0 0.0
    %1504 = vmatpush1.msra.mxu0 0.0
    %1505 = vmatprep.subr.mxu0 0.0
    %1506 = vmatpush1.msra.mxu0 0.0
    %1507 = vmatprep.subr.mxu0 0.0
    %1508 = vmatpush1.msra.mxu0 0.0
    %1509 = vmatprep.subr.mxu0 0.0
    %1510 = vmatpush1.msra.mxu0 0.0
    %1511 = vmatprep.subr.mxu0 0.0
    %1512 = vmatpush1.msra.mxu0 0.0
    %1513 = vmatprep.subr.mxu0 0.0
    %1514 = vmatpush1.msra.mxu0 0.0
    %1515 = vmatprep.subr.mxu0 0.0
    %1516 = vmatpush1.msra.mxu0 0.0
    %1517 = vmatprep.subr.mxu0 0.0
    %1518 = vmatpush1.msra.mxu0 0.0
    %1519 = vmatprep.subr.mxu0 0.0
    %1520 = vmatpush1.msra.mxu0 0.0
    %1521 = vmatprep.subr.mxu0 0.0
    %1522 = vmatpush1.msra.mxu0 0.0
    %1523 = vmatprep.subr.mxu0 0.0
    %1524 = vmatpush1.msra.mxu0 0.0
    %1525 = vmatprep.subr.mxu0 0.0
    %1526 = vmatpush1.msra.mxu0 0.0
    %1527 = vmatprep.subr.mxu0 0.0
    %1528 = vmatpush1.msra.mxu0 0.0
    %1529 = vmatprep.subr.mxu0 0.0
    %1530 = vmatpush1.msra.mxu0 0.0
    %1531 = vmatprep.subr.mxu0 0.0
    %1532 = vmatpush1.msra.mxu0 0.0
    %1533 = vmatprep.subr.mxu0 0.0
    %1534 = vmatpush1.msra.mxu0 0.0
    %1535 = vmatprep.subr.mxu0 0.0
    %1536 = vmatpush1.msra.mxu0 0.0
    %1537 = vmatprep.subr.mxu0 0.0
    %1538 = vmatpush1.msra.mxu0 0.0
    %1539 = vmatprep.subr.mxu0 0.0
    %1540 = vmatpush1.msra.mxu0 0.0
    %1541 = vmatprep.subr.mxu0 0.0
    %1542 = vmatpush1.msra.mxu0 0.0
    %1543 = vmatprep.subr.mxu0 0.0
    %1544 = vmatpush1.msra.mxu0 0.0
    %1545 = vmatprep.subr.mxu0 0.0
    %1546 = vmatpush1.msra.mxu0 0.0
    %1547 = vmatprep.mubr.f32.mxu0 0.0
    %1548 = vmatmul.mubr.f32.gmra.mrb[0].mxu0 %v1478
    %v1549 = vpop.f32.mrb[0].mxu0
    %v1550 = vadd.f32 %v1475, %v1549
    %v1551 = vpop.f32.mrb[0].mxu0
    %1552 = vmatprep.mubr.f32.mxu0 0.0
    %1553 = vmatmul.mubr.f32.gmra.mrb[0].mxu0 %v1481
    %v1554 = vpop.f32.mrb[0].mxu0
    %v1555 = vadd.f32 %v1475, %v1554
    %v1556 = vpop.f32.mrb[0].mxu0
    %1557 = vdwg.mxu0
    %v1558 = vadd.f32 %v1368, %v1550
    %v1559 = vadd.f32 %v1369, %v1555
    %v1560 = vsel %vm58, %v1558, 0.0
    %1561 = vadd.xlane.f32.xlu0 %v1560
    %v1562 = vpop.xlane.xlu0 %1561
    %v1563 = vsel %vm58, %v1559, 0.0
    %1564 = vadd.xlane.f32.xlu0 %v1563
    %v1565 = vpop.xlane.xlu0 %1564
    %v1566 = vmul.f32 %v1562, %v1337
    %v1567 = vmul.f32 %v1565, %v1337
    %v1568 = vsub.f32 %v1558, %v1566
    %v1569 = vsub.f32 %v1559, %v1567
    %v1570 = vmul.f32 %v1568, %v1568
    %v1571 = vmul.f32 %v1569, %v1569
    %v1572 = vsel %vm58, %v1570, 0.0
    %1573 = vadd.xlane.f32.xlu0 %v1572
    %v1574 = vpop.xlane.xlu0 %1573
    %v1575 = vsel %vm58, %v1571, 0.0
    %1576 = vadd.xlane.f32.xlu0 %v1575
    %v1577 = vpop.xlane.xlu0 %1576
    %v1578 = vmul.f32 %v1574, %v1337
    %v1579 = vmul.f32 %v1577, %v1337
    %v1580 = vadd.f32 %v1578, 1e-05
    %v1581 = vadd.f32 %v1579, 1e-05
    %v1582 = vrsqrt.pop %v1580
    %v1583 = vrsqrt.pop %v1581
    %v1584 = vmul.f32 %v1568, %v1582
    %v1585 = vmul.f32 %v1569, %v1583
    %v1586 = vlaneseq
    %v1587 = vshrl.u32 %v1586, 7
    %v1588 = vsub.s32 4, %v1587
    %v1589 = vrot.slane %v46, %v1588
    %v1590 = vmul.f32 %v1584, %v1589
    %v1591 = vmul.f32 %v1585, %v1589
    %v1592 = vlaneseq
    %v1593 = vshrl.u32 %v1592, 7
    %v1594 = vsub.s32 5, %v1593
    %v1595 = vrot.slane %v46, %v1594
    %v1596 = vadd.f32 %v1590, %v1595
    %v1597 = vadd.f32 %v1591, %v1595
    %1598 = vst.msk [vmem:[#allocation5] sm:$0xff] %vm58, %v1596
    %1599 = vst.msk [vmem:[#allocation5 + $0x8] sm:$0xff] %vm58, %v1597
    // Predicated region
    $region38: #{tpu_custom_call.1} parent=1 // pred_check
      _
    $region39: #{tpu_custom_call.1} parent=1 // pred_check_branch
      %1601 = sbr.rel (0) target = $region41
    $region40: #{tpu_custom_call.1} parent=1 // pred_region
      %s1603 = ssub.s32 256, 256
      %1604 = vsyncadd [#allocation4], %s1603
      %s1605 = sshll.u32 [#allocation5], 4
      %s1606 = int_to_ptr.vmem [resolvable:$true] %s1605
      %1611 = dma.vmem_to_hbm [thread:$0]  %s1606, 256, %s8, [#allocation4], 128, 128, 8
    $region41: #{tpu_custom_call.1} parent=1 // pred_fallthru
      _
    // Predicated region
    $region42: #{tpu_custom_call.1} parent=1 // pred_check
      _
    $region43: #{tpu_custom_call.1} parent=1 // pred_check_branch
      %1613 = sbr.rel (0) target = $region45
    $region44: #{tpu_custom_call.1} parent=1 // pred_region
      %1614 = dma.done [#allocation4], 256
    $region45: #{tpu_custom_call.1} parent=1 // pred_fallthru
      _
    %1615 = vsyncpa [#allocation3], 1
    %1616 = vsyncpa [#allocation4], 1

</llo_original>
